<compile_context>
chip_gen: v7x
topology: tpu7x:2x2x1
jax: 0.10.0
libtpu: 0.0.40
codegen_flags: <defaults>
</compile_context>

<pallas_src>
import jax
import jax.numpy as jnp
from jax import lax
from jax.experimental import pallas as pl
from jax.experimental.pallas import tpu as pltpu


def _round_up(x, m):
    return ((x + m - 1) // m) * m


def _unfold3_lanes(a):
    """a: (C, W).  Returns (3C, W) with rows [a[:,r-1]; a[:,r]; a[:,r+1]],
    zero-filled at the window edges."""
    c = a.shape[0]
    zero = jnp.zeros((c, 1), a.dtype)
    left = jnp.concatenate([zero, a[:, :-1]], axis=1)    # a[:, r-1]
    right = jnp.concatenate([a[:, 1:], zero], axis=1)    # a[:, r+1]
    return jnp.concatenate([left, a, right], axis=0)


def _make_kernel(n_points, tile_n, halo):
    win = tile_n + 2 * halo

    def kernel(x_ref, w1_ref, b1_ref, w2_ref, b2_ref, w3_ref, b3_ref, o_ref):
        j = pl.program_id(1)
        # Global point index of each lane of this window; lanes outside [0, N)
        # are padding and their h1/h2 must be zero to match global zero-padding.
        g = j * tile_n - halo + lax.broadcasted_iota(jnp.int32, (1, win), 1)
        valid = jnp.logical_and(g >= 0, g < n_points)          # (1, WIN)

        mxu = w1_ref.dtype
        x = x_ref[0, 0]                                        # (3, WIN) f32

        # conv1: (64, 9) @ (9, WIN)  -> f32 accum, bias/ReLU/mask in f32
        h = jnp.dot(w1_ref[...], _unfold3_lanes(x).astype(mxu),
                    preferred_element_type=jnp.float32) + b1_ref[...]
        h = jnp.where(valid, jnp.maximum(h, 0.0), 0.0)

        # conv2: (128, 192) @ (192, WIN)   -- dominant MXU matmul
        h = jnp.dot(w2_ref[...], _unfold3_lanes(h.astype(mxu)),
                    preferred_element_type=jnp.float32) + b2_ref[...]
        h = jnp.where(valid, jnp.maximum(h, 0.0), 0.0)

        # conv3: (3, 384) @ (384, WIN) -> (3, WIN); write only the central TN
        # lanes (halo recompute), lane-dense (3, TN) store.
        y = jnp.dot(w3_ref[...], _unfold3_lanes(h.astype(mxu)),
                    preferred_element_type=jnp.float32) + b3_ref[...]
        o_ref[0] = y[:, halo:halo + tile_n].astype(o_ref.dtype)

    return kernel


def geometric_semantic_fusion(x, params, *, tile_n=1024, mxu_dtype=jnp.bfloat16):
    """x: (B, N, 3) f32; params: PyTorch-layout conv weights (Cout, Cin, 3), biases (Cout,)."""
    B, N, cin = x.shape
    assert cin == 3
    HALO = 4                                       # >= 3-layer receptive field (3)
    TN = max(128, min(_round_up(tile_n, 128), _round_up(N, 128)))
    T = -(-N // TN)
    N_t = T * TN
    WIN = TN + 2 * HALO

    # Channels-first, zero-padded, overlapping windows with a HALO-point skirt.
    x_cf = jnp.transpose(x, (0, 2, 1))                                  # (B, 3, N)
    x_pad = jnp.pad(x_cf, ((0, 0), (0, 0), (HALO, N_t - N + HALO)))     # (B, 3, N_t+2H)
    x_win = jnp.stack([x_pad[:, :, j * TN: j * TN + WIN] for j in range(T)],
                      axis=1)                                           # (B, T, 3, WIN)

    def fuse_w(w):
        # (Cout, Cin, K) -> (Cout, K*Cin), tap-major columns to match _unfold3_lanes.
        co, ci, k = w.shape
        return jnp.transpose(w, (0, 2, 1)).reshape(co, k * ci).astype(mxu_dtype)

    w1 = fuse_w(params["w1"]); b1 = params["b1"].reshape(-1, 1).astype(jnp.float32)
    w2 = fuse_w(params["w2"]); b2 = params["b2"].reshape(-1, 1).astype(jnp.float32)
    w3 = fuse_w(params["w3"]); b3 = params["b3"].reshape(-1, 1).astype(jnp.float32)

    const2d = lambda arr: pl.BlockSpec(arr.shape, lambda b, j: (0, 0))  # VMEM-resident

    flops = 2 * B * N_t * (64 * 3 * 3 + 128 * 64 * 3 + 3 * 128 * 3)
    bytes_accessed = (int(x_win.size) * x_win.dtype.itemsize
                      + B * 3 * N_t * 4
                      + sum(int(a.size) * a.dtype.itemsize
                            for a in (w1, b1, w2, b2, w3, b3)))

    out_cf = pl.pallas_call(
        _make_kernel(N, TN, HALO),
        out_shape=jax.ShapeDtypeStruct((B, 3, N_t), jnp.float32),
        grid_spec=pltpu.PrefetchScalarGridSpec(
            num_scalar_prefetch=0,
            grid=(B, T),
            in_specs=[
                pl.BlockSpec((1, 1, 3, WIN), lambda b, j: (b, j, 0, 0)),
                const2d(w1), const2d(b1),
                const2d(w2), const2d(b2),
                const2d(w3), const2d(b3),
            ],
            out_specs=pl.BlockSpec((1, 3, TN), lambda b, j: (b, 0, j)),
        ),
        compiler_params=pltpu.CompilerParams(
            dimension_semantics=("parallel", "parallel"),
            vmem_limit_bytes=32 * 1024 * 1024),
        cost_estimate=pl.CostEstimate(flops=flops, transcendentals=0,
                                      bytes_accessed=bytes_accessed),
    )(x_win, w1, b1, w2, b2, w3, b3)

    return jnp.transpose(out_cf[:, :, :N], (0, 2, 1))                   # (B, N, 3)


def _init_params(key):
    """Deterministic synthetic init; PyTorch nn.Conv1d layout: w (Cout, Cin, 3), b (Cout,)."""
    ks = jax.random.split(key, 6)

    def conv_w(k, cin, cout):
        bound = (1.0 / (cin * 3)) ** 0.5
        return jax.random.uniform(k, (cout, cin, 3), jnp.float32, -bound, bound)

    def conv_b(k, cin, cout):
        bound = (1.0 / (cin * 3)) ** 0.5
        return jax.random.uniform(k, (cout,), jnp.float32, -bound, bound)

    return {
        "w1": conv_w(ks[0], 3, 64), "b1": conv_b(ks[1], 3, 64),
        "w2": conv_w(ks[2], 64, 128), "b2": conv_b(ks[3], 64, 128),
        "w3": conv_w(ks[4], 128, 3), "b3": conv_b(ks[5], 128, 3),
    }


def _reference(x, params):
    """Pure-JAX reference in NCW layout, exactly mirroring the PyTorch module."""
    def conv(xc, w, b):
        y = lax.conv_general_dilated(
            xc, w, window_strides=(1,), padding=[(1, 1)],
            dimension_numbers=("NCW", "OIW", "NCW"),
            precision=lax.Precision.HIGHEST)
        return y + b[None, :, None]

    xc = jnp.transpose(x, (0, 2, 1))                       # (B, 3, N)
    h1 = jnp.maximum(conv(xc, params["w1"], params["b1"]), 0.0)
    h2 = jnp.maximum(conv(h1, params["w2"], params["b2"]), 0.0)
    y = conv(h2, params["w3"], params["b3"])
    return jnp.transpose(y, (0, 2, 1))                     # (B, N, 3)


if __name__ == "__main__":
    key = jax.random.PRNGKey(0)
    kx, kx2, kp = jax.random.split(key, 3)
    params = _init_params(kp)

    # Case 1: small spec-sized smoke test (single tile).
    B, N = 2, 16
    x = jax.random.normal(kx, (B, N, 3), jnp.float32)
    ref = _reference(x, params)

    out_f32 = jax.block_until_ready(
        geometric_semantic_fusion(x, params, mxu_dtype=jnp.float32))
    assert out_f32.shape == (B, N, 3)
    assert jnp.allclose(out_f32, ref, atol=1e-3, rtol=1e-3), "f32 path mismatch"

    out_bf16 = jax.block_until_ready(geometric_semantic_fusion(x, params))
    assert jnp.allclose(out_bf16, ref, atol=5e-2, rtol=5e-2), "bf16 path mismatch"

    # Case 2: multi-tile path (N not a multiple of the tile) exercising the
    # halo recompute + boundary masking across tile seams.
    N2 = 300
    x2 = jax.random.normal(kx2, (B, N2, 3), jnp.float32)
    ref2 = _reference(x2, params)
    out2 = jax.block_until_ready(
        geometric_semantic_fusion(x2, params, tile_n=128, mxu_dtype=jnp.float32))
    assert out2.shape == (B, N2, 3)
    assert jnp.allclose(out2, ref2, atol=1e-3, rtol=1e-3), "tiled path mismatch"

    print("KERNEL_OK")
</pallas_src>

<mosaic_0001>
module attributes {stable_mosaic.version = 11 : i64} {
  func.func @kernel(%arg0: i32, %arg1: i32, %arg2: memref<1x1x3x136xf32, #tpu.memory_space<vmem>>, %arg3: memref<64x9xf32, #tpu.memory_space<vmem>>, %arg4: memref<64x1xf32, #tpu.memory_space<vmem>>, %arg5: memref<128x192xf32, #tpu.memory_space<vmem>>, %arg6: memref<128x1xf32, #tpu.memory_space<vmem>>, %arg7: memref<3x384xf32, #tpu.memory_space<vmem>>, %arg8: memref<3x1xf32, #tpu.memory_space<vmem>>, %arg9: memref<1x3x128xf32, #tpu.memory_space<vmem>>) attributes {dimension_semantics = [#tpu.dimension_semantics<parallel>, #tpu.dimension_semantics<parallel>], iteration_bounds = array<i64: 2, 1>, scalar_prefetch = 0 : i64, scratch_operands = 0 : i64, tpu.core_type = #tpu.core_type<tc>, window_params = [{transform_indices = @transform_0, window_bounds = array<i64: 1, 1, 3, 136>}, {pipeline_mode = #tpu.pipeline_mode<synchronous>, transform_indices = @transform_1, window_bounds = array<i64: 64, 9>}, {pipeline_mode = #tpu.pipeline_mode<synchronous>, transform_indices = @transform_2, window_bounds = array<i64: 64, 1>}, {pipeline_mode = #tpu.pipeline_mode<synchronous>, transform_indices = @transform_3, window_bounds = array<i64: 128, 192>}, {pipeline_mode = #tpu.pipeline_mode<synchronous>, transform_indices = @transform_4, window_bounds = array<i64: 128, 1>}, {pipeline_mode = #tpu.pipeline_mode<synchronous>, transform_indices = @transform_5, window_bounds = array<i64: 3, 384>}, {pipeline_mode = #tpu.pipeline_mode<synchronous>, transform_indices = @transform_6, window_bounds = array<i64: 3, 1>}, {transform_indices = @transform_7, window_bounds = array<i64: 1, 3, 128>}]} {
    %c128_i32 = arith.constant 128 : i32
    %0 = arith.muli %arg1, %c128_i32 : i32
    %c4_i32 = arith.constant 4 : i32
    %1 = arith.subi %0, %c4_i32 : i32
    %2 = tpu.iota {dimensions = array<i32: 1>} : vector<1x136xi32>
    %3 = vector.broadcast %1 : i32 to vector<1x136xi32>
    %4 = arith.addi %3, %2 : vector<1x136xi32>
    %c0_i32 = arith.constant 0 : i32
    %5 = vector.broadcast %c0_i32 : i32 to vector<1x136xi32>
    %6 = arith.cmpi sge, %4, %5 : vector<1x136xi32>
    %c16_i32 = arith.constant 16 : i32
    %7 = vector.broadcast %c16_i32 : i32 to vector<1x136xi32>
    %8 = arith.cmpi slt, %4, %7 : vector<1x136xi32>
    %9 = arith.andi %6, %8 : vector<1x136xi1>
    %c0 = arith.constant 0 : index
    %c0_0 = arith.constant 0 : index
    %c0_1 = arith.constant 0 : index
    %c0_2 = arith.constant 0 : index
    %10 = vector.load %arg2[%c0, %c0_0, %c0_1, %c0_2] : memref<1x1x3x136xf32, #tpu.memory_space<vmem>>, vector<1x1x3x136xf32>
    %11 = vector.shape_cast %10 : vector<1x1x3x136xf32> to vector<3x136xf32>
    %c0_3 = arith.constant 0 : index
    %c0_4 = arith.constant 0 : index
    %12 = vector.load %arg3[%c0_3, %c0_4] : memref<64x9xf32, #tpu.memory_space<vmem>>, vector<64x9xf32>
    %cst = arith.constant 0.000000e+00 : f32
    %13 = vector.broadcast %cst : f32 to vector<3x1xf32>
    %14 = vector.extract_strided_slice %11 {offsets = [0, 0], sizes = [3, 135], strides = [1, 1]} : vector<3x136xf32> to vector<3x135xf32>
    %15 = tpu.concatenate %13, %14 in 1 : vector<3x1xf32>, vector<3x135xf32> -> vector<3x136xf32>
    %16 = vector.extract_strided_slice %11 {offsets = [0, 1], sizes = [3, 135], strides = [1, 1]} : vector<3x136xf32> to vector<3x135xf32>
    %17 = tpu.concatenate %16, %13 in 1 : vector<3x135xf32>, vector<3x1xf32> -> vector<3x136xf32>
    %18 = tpu.concatenate %15, %11, %17 in 0 : vector<3x136xf32>, vector<3x136xf32>, vector<3x136xf32> -> vector<9x136xf32>
    %cst_5 = arith.constant dense<0.000000e+00> : vector<64x136xf32>
    %19 = tpu.matmul %12, %18, %cst_5 {dimension_numbers = #tpu.dot_dimension_numbers<[1], [0], [0], [1], [0, 0, 1, 1], [], []>} : vector<64x9xf32>, vector<9x136xf32>, vector<64x136xf32> -> vector<64x136xf32>
    %c0_6 = arith.constant 0 : index
    %c0_7 = arith.constant 0 : index
    %20 = vector.load %arg4[%c0_6, %c0_7] : memref<64x1xf32, #tpu.memory_space<vmem>>, vector<64x1xf32>
    %21 = vector.broadcast %20 : vector<64x1xf32> to vector<64x136xf32>
    %22 = arith.addf %19, %21 : vector<64x136xf32>
    %cst_8 = arith.constant 0.000000e+00 : f32
    %23 = vector.broadcast %cst_8 : f32 to vector<64x136xf32>
    %24 = arith.maximumf %22, %23 : vector<64x136xf32>
    %cst_9 = arith.constant 0.000000e+00 : f32
    %25 = vector.shape_cast %9 : vector<1x136xi1> to vector<1x136xi1>
    %26 = vector.broadcast %25 : vector<1x136xi1> to vector<64x136xi1>
    %27 = vector.broadcast %cst_9 : f32 to vector<64x136xf32>
    %28 = arith.select %26, %24, %27 : vector<64x136xi1>, vector<64x136xf32>
    %c0_10 = arith.constant 0 : index
    %c0_11 = arith.constant 0 : index
    %29 = vector.load %arg5[%c0_10, %c0_11] : memref<128x192xf32, #tpu.memory_space<vmem>>, vector<128x192xf32>
    %cst_12 = arith.constant 0.000000e+00 : f32
    %30 = vector.broadcast %cst_12 : f32 to vector<64x1xf32>
    %31 = vector.extract_strided_slice %28 {offsets = [0, 0], sizes = [64, 135], strides = [1, 1]} : vector<64x136xf32> to vector<64x135xf32>
    %32 = tpu.concatenate %30, %31 in 1 : vector<64x1xf32>, vector<64x135xf32> -> vector<64x136xf32>
    %33 = vector.extract_strided_slice %28 {offsets = [0, 1], sizes = [64, 135], strides = [1, 1]} : vector<64x136xf32> to vector<64x135xf32>
    %34 = tpu.concatenate %33, %30 in 1 : vector<64x135xf32>, vector<64x1xf32> -> vector<64x136xf32>
    %35 = tpu.concatenate %32, %28, %34 in 0 : vector<64x136xf32>, vector<64x136xf32>, vector<64x136xf32> -> vector<192x136xf32>
    %cst_13 = arith.constant dense<0.000000e+00> : vector<128x136xf32>
    %36 = tpu.matmul %29, %35, %cst_13 {dimension_numbers = #tpu.dot_dimension_numbers<[1], [0], [0], [1], [0, 0, 1, 1], [], []>} : vector<128x192xf32>, vector<192x136xf32>, vector<128x136xf32> -> vector<128x136xf32>
    %c0_14 = arith.constant 0 : index
    %c0_15 = arith.constant 0 : index
    %37 = vector.load %arg6[%c0_14, %c0_15] : memref<128x1xf32, #tpu.memory_space<vmem>>, vector<128x1xf32>
    %38 = vector.broadcast %37 : vector<128x1xf32> to vector<128x136xf32>
    %39 = arith.addf %36, %38 : vector<128x136xf32>
    %cst_16 = arith.constant 0.000000e+00 : f32
    %40 = vector.broadcast %cst_16 : f32 to vector<128x136xf32>
    %41 = arith.maximumf %39, %40 : vector<128x136xf32>
    %cst_17 = arith.constant 0.000000e+00 : f32
    %42 = vector.shape_cast %9 : vector<1x136xi1> to vector<1x136xi1>
    %43 = vector.broadcast %42 : vector<1x136xi1> to vector<128x136xi1>
    %44 = vector.broadcast %cst_17 : f32 to vector<128x136xf32>
    %45 = arith.select %43, %41, %44 : vector<128x136xi1>, vector<128x136xf32>
    %c0_18 = arith.constant 0 : index
    %c0_19 = arith.constant 0 : index
    %46 = vector.load %arg7[%c0_18, %c0_19] : memref<3x384xf32, #tpu.memory_space<vmem>>, vector<3x384xf32>
    %cst_20 = arith.constant 0.000000e+00 : f32
    %47 = vector.broadcast %cst_20 : f32 to vector<128x1xf32>
    %48 = vector.extract_strided_slice %45 {offsets = [0, 0], sizes = [128, 135], strides = [1, 1]} : vector<128x136xf32> to vector<128x135xf32>
    %49 = tpu.concatenate %47, %48 in 1 : vector<128x1xf32>, vector<128x135xf32> -> vector<128x136xf32>
    %50 = vector.extract_strided_slice %45 {offsets = [0, 1], sizes = [128, 135], strides = [1, 1]} : vector<128x136xf32> to vector<128x135xf32>
    %51 = tpu.concatenate %50, %47 in 1 : vector<128x135xf32>, vector<128x1xf32> -> vector<128x136xf32>
    %52 = tpu.concatenate %49, %45, %51 in 0 : vector<128x136xf32>, vector<128x136xf32>, vector<128x136xf32> -> vector<384x136xf32>
    %cst_21 = arith.constant dense<0.000000e+00> : vector<3x136xf32>
    %53 = tpu.matmul %46, %52, %cst_21 {dimension_numbers = #tpu.dot_dimension_numbers<[1], [0], [0], [1], [0, 0, 1, 1], [], []>} : vector<3x384xf32>, vector<384x136xf32>, vector<3x136xf32> -> vector<3x136xf32>
    %c0_22 = arith.constant 0 : index
    %c0_23 = arith.constant 0 : index
    %54 = vector.load %arg8[%c0_22, %c0_23] : memref<3x1xf32, #tpu.memory_space<vmem>>, vector<3x1xf32>
    %55 = vector.broadcast %54 : vector<3x1xf32> to vector<3x136xf32>
    %56 = arith.addf %53, %55 : vector<3x136xf32>
    %57 = vector.extract_strided_slice %56 {offsets = [0, 4], sizes = [3, 128], strides = [1, 1]} : vector<3x136xf32> to vector<3x128xf32>
    %c0_24 = arith.constant 0 : index
    %c0_25 = arith.constant 0 : index
    %c0_26 = arith.constant 0 : index
    %58 = vector.load %arg9[%c0_24, %c0_25, %c0_26] : memref<1x3x128xf32, #tpu.memory_space<vmem>>, vector<1x3x128xf32>
    %59 = vector.shape_cast %58 : vector<1x3x128xf32> to vector<3x128xf32>
    %60 = vector.shape_cast %57 : vector<3x128xf32> to vector<1x3x128xf32>
    tpu.vector_store %arg9[%c0_24, %c0_25, %c0_26], %60 {strides = array<i32>} : memref<1x3x128xf32, #tpu.memory_space<vmem>>, vector<1x3x128xf32>,
    return
  }
  func.func @transform_0(%arg0: i32, %arg1: i32) -> (i32, i32, i32, i32) {
    %c0_i32 = arith.constant 0 : i32
    %c0_i32_0 = arith.constant 0 : i32
    %c0_i32_1 = arith.constant 0 : i32
    return %arg0, %arg1, %c0_i32, %c0_i32_0 : i32, i32, i32, i32
  }
  func.func @transform_1(%arg0: i32, %arg1: i32) -> (i32, i32) {
    %c0_i32 = arith.constant 0 : i32
    %c0_i32_0 = arith.constant 0 : i32
    %c0_i32_1 = arith.constant 0 : i32
    return %c0_i32, %c0_i32_0 : i32, i32
  }
  func.func @transform_2(%arg0: i32, %arg1: i32) -> (i32, i32) {
    %c0_i32 = arith.constant 0 : i32
    %c0_i32_0 = arith.constant 0 : i32
    %c0_i32_1 = arith.constant 0 : i32
    return %c0_i32, %c0_i32_0 : i32, i32
  }
  func.func @transform_3(%arg0: i32, %arg1: i32) -> (i32, i32) {
    %c0_i32 = arith.constant 0 : i32
    %c0_i32_0 = arith.constant 0 : i32
    %c0_i32_1 = arith.constant 0 : i32
    return %c0_i32, %c0_i32_0 : i32, i32
  }
  func.func @transform_4(%arg0: i32, %arg1: i32) -> (i32, i32) {
    %c0_i32 = arith.constant 0 : i32
    %c0_i32_0 = arith.constant 0 : i32
    %c0_i32_1 = arith.constant 0 : i32
    return %c0_i32, %c0_i32_0 : i32, i32
  }
  func.func @transform_5(%arg0: i32, %arg1: i32) -> (i32, i32) {
    %c0_i32 = arith.constant 0 : i32
    %c0_i32_0 = arith.constant 0 : i32
    %c0_i32_1 = arith.constant 0 : i32
    return %c0_i32, %c0_i32_0 : i32, i32
  }
  func.func @transform_6(%arg0: i32, %arg1: i32) -> (i32, i32) {
    %c0_i32 = arith.constant 0 : i32
    %c0_i32_0 = arith.constant 0 : i32
    %c0_i32_1 = arith.constant 0 : i32
    return %c0_i32, %c0_i32_0 : i32, i32
  }
  func.func @transform_7(%arg0: i32, %arg1: i32) -> (i32, i32, i32) {
    %c0_i32 = arith.constant 0 : i32
    %c0_i32_0 = arith.constant 0 : i32
    return %arg0, %c0_i32, %arg1 : i32, i32, i32
  }
}

</mosaic_0001>

<llo_original>
// kernel: tpu_custom_call.1
$region0: #{tpu_custom_call.1}
  #allocation0 [shape = 'u32[]', space=smem, size = 0x4, offset = 0x4, fixed_abs, tag = 'smem constant byte address 0x4 - core index']
  #allocation1 [shape = 'u32[144,128]{1,0:T(1,128)}', space=vmem, size = 0x12000, scoped, tag = 'internal scratch']
  %s0 = inlined_call_operand.vmem [shape: f32[2,1,3,136], index: 0, kind: input, shape index: {}]
  %s1 = inlined_call_operand.vmem [shape: f32[64,9], index: 1, kind: input, shape index: {}]
  %s2 = inlined_call_operand.vmem [shape: f32[64,1], index: 2, kind: input, shape index: {}]
  %s3 = inlined_call_operand.vmem [shape: f32[128,192], index: 3, kind: input, shape index: {}]
  %s4 = inlined_call_operand.vmem [shape: f32[128,1], index: 4, kind: input, shape index: {}]
  %s5 = inlined_call_operand.vmem [shape: f32[3,384], index: 5, kind: input, shape index: {}]
  %s6 = inlined_call_operand.vmem [shape: f32[3,1], index: 6, kind: input, shape index: {}]
  %s7 = inlined_call_operand.vmem [shape: f32[2,3,128], index: 7, kind: output, shape index: {}]
  %s8 = sld [smem:[#allocation0]]
  $region61: #{tpu_custom_call.1} parent=0
    _
  %s10 = ssub.s32 1, %s8
  %s11 = scalar_select 0, %s10, %s8
  loop: start=0, step=1, limit=4
  $region2: #{tpu_custom_call.1} parent=0 // loop_pre_header
    _
  $region3: #{tpu_custom_call.1} parent=0 // loop_header
    %s13 = sphi 0, %s17
    %p14 = scmp.ge.s32.totalorder %s13, 4
    %s20 = sphi 0, %s32
    %s21 = sphi 0, %s28
    %s22 = sphi 0, %s20
    %s23 = sphi 0, %s21
    %s24 = sphi 0, %s22
    %s25 = sphi 0, %s23
    %s37 = sphi 0, %s39
    %s40 = sphi 0, %s37
    %s41 = sphi 0, %s40
    %s57 = sphi 0, %s41
    %s61 = sphi 0, %s61
    %s63 = sphi 0, %s61
    %s64 = sphi 0, %s63
    %s78 = sphi 0, %s64
    %s82 = sphi 0, %s82
    %s84 = sphi 0, %s82
    %s85 = sphi 0, %s84
    %s99 = sphi 0, %s85
    %s103 = sphi 0, %s103
    %s105 = sphi 0, %s103
    %s106 = sphi 0, %s105
    %s120 = sphi 0, %s106
    %s124 = sphi 0, %s124
    %s126 = sphi 0, %s124
    %s127 = sphi 0, %s126
    %s141 = sphi 0, %s127
    %s145 = sphi 0, %s145
    %s147 = sphi 0, %s145
    %s148 = sphi 0, %s147
    %s162 = sphi 0, %s148
    %s166 = sphi 0, %s166
    %s168 = sphi 0, %s166
    %s169 = sphi 0, %s168
    %s183 = sphi 0, %s169
    %s191 = sphi 0, %s193
    %s194 = sphi 0, %s191
    %s195 = sphi 0, %s194
    %s211 = sphi 0, %s195
  $region4: #{tpu_custom_call.1} parent=0 // loop_header_branch
    %16 = sbr.rel (%p14) target = $region8
  $region5: #{tpu_custom_call.1} parent=0 // loop_body
    %s18 = ssub.s32 %s13, 1
    %s19 = ssub.s32 %s13, 2
    %s26 = sadd.s32 1, %s21
    %p27 = scmp.ge.s32.totalorder %s26, 1
    %s28 = scalar_select %p27, 0, %s26
    %s29 = sadd.s32 1, %s20
    %s30 = scalar_select %p27, %s29, %s20
    %p31 = scmp.ge.s32.totalorder %s30, 2
    %s32 = scalar_select %p31, 0, %s30
    %s33 = ssub.s32 %s20, %s32
    %s34 = ssub.s32 %s21, %s28
    %s35 = sor.u32 %s33, %s34
    %p36 = scmp.eq.s32.totalorder %s35, 0
    %s38 = sadd.s32 %s37, 1
    %s39 = scalar_select %p36, %s37, %s38
    %p42 = pneg %p36
    %p43 = scmp.eq.s32.totalorder %s13, 1
    %p44 = por %p42, %p43
    %p45 = scmp.ne.s32.totalorder %s37, %s40
    %p46 = scmp.eq.s32.totalorder %s13, 0
    %p47 = por %p45, %p46
    %p48 = scmp.ne.s32.totalorder %s37, %s40
    %p49 = scmp.eq.s32.totalorder %s18, 1
    %p50 = por %p48, %p49
    %p51 = scmp.ne.s32.totalorder %s40, %s41
    %p52 = scmp.eq.s32.totalorder %s18, 0
    %p53 = por %p51, %p52
    %p54 = scmp.ne.s32.totalorder %s40, %s41
    %p55 = scmp.eq.s32.totalorder %s19, 1
    %p56 = por %p54, %p55
    %p58 = scmp.ne.s32.totalorder %s41, %s57
    %p59 = scmp.eq.s32.totalorder %s19, 0
    %p60 = por %p58, %p59
    %s62 = sadd.s32 %s61, 1
    %p65 = scmp.eq.s32.totalorder %s13, 1
    %p66 = scmp.ne.s32.totalorder %s61, %s63
    %p67 = scmp.eq.s32.totalorder %s13, 0
    %p68 = por %p66, %p67
    %p69 = scmp.ne.s32.totalorder %s61, %s63
    %p70 = scmp.eq.s32.totalorder %s18, 1
    %p71 = por %p69, %p70
    %p72 = scmp.ne.s32.totalorder %s63, %s64
    %p73 = scmp.eq.s32.totalorder %s18, 0
    %p74 = por %p72, %p73
    %p75 = scmp.ne.s32.totalorder %s63, %s64
    %p76 = scmp.eq.s32.totalorder %s19, 1
    %p77 = por %p75, %p76
    %p79 = scmp.ne.s32.totalorder %s64, %s78
    %p80 = scmp.eq.s32.totalorder %s19, 0
    %p81 = por %p79, %p80
    %s83 = sadd.s32 %s82, 1
    %p86 = scmp.eq.s32.totalorder %s13, 1
    %p87 = scmp.ne.s32.totalorder %s82, %s84
    %p88 = scmp.eq.s32.totalorder %s13, 0
    %p89 = por %p87, %p88
    %p90 = scmp.ne.s32.totalorder %s82, %s84
    %p91 = scmp.eq.s32.totalorder %s18, 1
    %p92 = por %p90, %p91
    %p93 = scmp.ne.s32.totalorder %s84, %s85
    %p94 = scmp.eq.s32.totalorder %s18, 0
    %p95 = por %p93, %p94
    %p96 = scmp.ne.s32.totalorder %s84, %s85
    %p97 = scmp.eq.s32.totalorder %s19, 1
    %p98 = por %p96, %p97
    %p100 = scmp.ne.s32.totalorder %s85, %s99
    %p101 = scmp.eq.s32.totalorder %s19, 0
    %p102 = por %p100, %p101
    %s104 = sadd.s32 %s103, 1
    %p107 = scmp.eq.s32.totalorder %s13, 1
    %p108 = scmp.ne.s32.totalorder %s103, %s105
    %p109 = scmp.eq.s32.totalorder %s13, 0
    %p110 = por %p108, %p109
    %p111 = scmp.ne.s32.totalorder %s103, %s105
    %p112 = scmp.eq.s32.totalorder %s18, 1
    %p113 = por %p111, %p112
    %p114 = scmp.ne.s32.totalorder %s105, %s106
    %p115 = scmp.eq.s32.totalorder %s18, 0
    %p116 = por %p114, %p115
    %p117 = scmp.ne.s32.totalorder %s105, %s106
    %p118 = scmp.eq.s32.totalorder %s19, 1
    %p119 = por %p117, %p118
    %p121 = scmp.ne.s32.totalorder %s106, %s120
    %p122 = scmp.eq.s32.totalorder %s19, 0
    %p123 = por %p121, %p122
    %s125 = sadd.s32 %s124, 1
    %p128 = scmp.eq.s32.totalorder %s13, 1
    %p129 = scmp.ne.s32.totalorder %s124, %s126
    %p130 = scmp.eq.s32.totalorder %s13, 0
    %p131 = por %p129, %p130
    %p132 = scmp.ne.s32.totalorder %s124, %s126
    %p133 = scmp.eq.s32.totalorder %s18, 1
    %p134 = por %p132, %p133
    %p135 = scmp.ne.s32.totalorder %s126, %s127
    %p136 = scmp.eq.s32.totalorder %s18, 0
    %p137 = por %p135, %p136
    %p138 = scmp.ne.s32.totalorder %s126, %s127
    %p139 = scmp.eq.s32.totalorder %s19, 1
    %p140 = por %p138, %p139
    %p142 = scmp.ne.s32.totalorder %s127, %s141
    %p143 = scmp.eq.s32.totalorder %s19, 0
    %p144 = por %p142, %p143
    %s146 = sadd.s32 %s145, 1
    %p149 = scmp.eq.s32.totalorder %s13, 1
    %p150 = scmp.ne.s32.totalorder %s145, %s147
    %p151 = scmp.eq.s32.totalorder %s13, 0
    %p152 = por %p150, %p151
    %p153 = scmp.ne.s32.totalorder %s145, %s147
    %p154 = scmp.eq.s32.totalorder %s18, 1
    %p155 = por %p153, %p154
    %p156 = scmp.ne.s32.totalorder %s147, %s148
    %p157 = scmp.eq.s32.totalorder %s18, 0
    %p158 = por %p156, %p157
    %p159 = scmp.ne.s32.totalorder %s147, %s148
    %p160 = scmp.eq.s32.totalorder %s19, 1
    %p161 = por %p159, %p160
    %p163 = scmp.ne.s32.totalorder %s148, %s162
    %p164 = scmp.eq.s32.totalorder %s19, 0
    %p165 = por %p163, %p164
    %s167 = sadd.s32 %s166, 1
    %p170 = scmp.eq.s32.totalorder %s13, 1
    %p171 = scmp.ne.s32.totalorder %s166, %s168
    %p172 = scmp.eq.s32.totalorder %s13, 0
    %p173 = por %p171, %p172
    %p174 = scmp.ne.s32.totalorder %s166, %s168
    %p175 = scmp.eq.s32.totalorder %s18, 1
    %p176 = por %p174, %p175
    %p177 = scmp.ne.s32.totalorder %s168, %s169
    %p178 = scmp.eq.s32.totalorder %s18, 0
    %p179 = por %p177, %p178
    %p180 = scmp.ne.s32.totalorder %s168, %s169
    %p181 = scmp.eq.s32.totalorder %s19, 1
    %p182 = por %p180, %p181
    %p184 = scmp.ne.s32.totalorder %s169, %s183
    %p185 = scmp.eq.s32.totalorder %s19, 0
    %p186 = por %p184, %p185
    %s187 = ssub.s32 %s20, %s32
    %s188 = ssub.s32 %s21, %s28
    %s189 = sor.u32 %s187, %s188
    %p190 = scmp.eq.s32.totalorder %s189, 0
    %s192 = sadd.s32 %s191, 1
    %s193 = scalar_select %p190, %s191, %s192
    %p196 = pneg %p190
    %p197 = scmp.eq.s32.totalorder %s13, 1
    %p198 = por %p196, %p197
    %p199 = scmp.ne.s32.totalorder %s191, %s194
    %p200 = scmp.eq.s32.totalorder %s13, 0
    %p201 = por %p199, %p200
    %p202 = scmp.ne.s32.totalorder %s191, %s194
    %p203 = scmp.eq.s32.totalorder %s18, 1
    %p204 = por %p202, %p203
    %p205 = scmp.ne.s32.totalorder %s194, %s195
    %p206 = scmp.eq.s32.totalorder %s18, 0
    %p207 = por %p205, %p206
    %p208 = scmp.ne.s32.totalorder %s194, %s195
    %p209 = scmp.eq.s32.totalorder %s19, 1
    %p210 = por %p208, %p209
    %p212 = scmp.ne.s32.totalorder %s195, %s211
    %p213 = scmp.eq.s32.totalorder %s19, 0
    %p214 = por %p212, %p213
    %p215 = scmp.le.s32.totalorder 1, %s13
    %p216 = scmp.lt.s32.totalorder %s13, 3
    %p217 = pnand %p215, %p216
    %p218 = pneg %p217
    // Predicated region
    $region9: #{tpu_custom_call.1} parent=5 // pred_check
      _
    $region10: #{tpu_custom_call.1} parent=5 // pred_check_branch
      %220 = sbr.rel (%p217) target = $region12
    $region11: #{tpu_custom_call.1} parent=5 // pred_region
      %s221 = ssub.s32 %s13, 1
      // Predicated region
      $region13: #{tpu_custom_call.1} parent=11 // pred_check
        %p222 = pneg %p74
      $region14: #{tpu_custom_call.1} parent=11 // pred_check_branch
        %224 = sbr.rel (%p222) target = $region16
      $region15: #{tpu_custom_call.1} parent=11 // pred_region
        _
      $region16: #{tpu_custom_call.1} parent=11 // pred_fallthru
        _
      // Predicated region
      $region17: #{tpu_custom_call.1} parent=11 // pred_check
        %p225 = pneg %p95
      $region18: #{tpu_custom_call.1} parent=11 // pred_check_branch
        %227 = sbr.rel (%p225) target = $region20
      $region19: #{tpu_custom_call.1} parent=11 // pred_region
        _
      $region20: #{tpu_custom_call.1} parent=11 // pred_fallthru
        _
      // Predicated region
      $region21: #{tpu_custom_call.1} parent=11 // pred_check
        %p228 = pneg %p116
      $region22: #{tpu_custom_call.1} parent=11 // pred_check_branch
        %230 = sbr.rel (%p228) target = $region24
      $region23: #{tpu_custom_call.1} parent=11 // pred_region
        _
      $region24: #{tpu_custom_call.1} parent=11 // pred_fallthru
        _
      // Predicated region
      $region25: #{tpu_custom_call.1} parent=11 // pred_check
        %p231 = pneg %p137
      $region26: #{tpu_custom_call.1} parent=11 // pred_check_branch
        %233 = sbr.rel (%p231) target = $region28
      $region27: #{tpu_custom_call.1} parent=11 // pred_region
        _
      $region28: #{tpu_custom_call.1} parent=11 // pred_fallthru
        _
      // Predicated region
      $region29: #{tpu_custom_call.1} parent=11 // pred_check
        %p234 = pneg %p158
      $region30: #{tpu_custom_call.1} parent=11 // pred_check_branch
        %236 = sbr.rel (%p234) target = $region32
      $region31: #{tpu_custom_call.1} parent=11 // pred_region
        _
      $region32: #{tpu_custom_call.1} parent=11 // pred_fallthru
        _
      // Predicated region
      $region33: #{tpu_custom_call.1} parent=11 // pred_check
        %p237 = pneg %p179
      $region34: #{tpu_custom_call.1} parent=11 // pred_check_branch
        %239 = sbr.rel (%p237) target = $region36
      $region35: #{tpu_custom_call.1} parent=11 // pred_region
        _
      $region36: #{tpu_custom_call.1} parent=11 // pred_fallthru
        _
    $region12: #{tpu_custom_call.1} parent=5 // pred_fallthru
      _
    %p240 = scmp.lt.s32.totalorder %s13, 2
    // Predicated region
    $region37: #{tpu_custom_call.1} parent=5 // pred_check
      %p241 = pneg %p240
    $region38: #{tpu_custom_call.1} parent=5 // pred_check_branch
      %243 = sbr.rel (%p241) target = $region40
    $region39: #{tpu_custom_call.1} parent=5 // pred_region
      // Predicated region
      $region41: #{tpu_custom_call.1} parent=39 // pred_check
        %p244 = pneg %p47
      $region42: #{tpu_custom_call.1} parent=39 // pred_check_branch
        %246 = sbr.rel (%p244) target = $region44
      $region43: #{tpu_custom_call.1} parent=39 // pred_region
        %p247 = scmp.lt.s32.totalorder %s20, 1
        %s248 = scalar_select %p247, %s20, 1
        %p249 = scmp.lt.s32.totalorder %s21, 0
        %s250 = scalar_select %p249, %s21, 0
        %s251 = smul.addr %s250, 2
        %s252 = smul.addr %s248, 2
        %s253 = sadd.s32 %s251, %s252
        %s254 = smul.addr %s253, 4
        %s255 = scalar_lea.vmem %s0, %s254
      $region44: #{tpu_custom_call.1} parent=39 // pred_fallthru
        _
    $region40: #{tpu_custom_call.1} parent=5 // pred_fallthru
      _
    %p256 = scmp.le.s32.totalorder 1, %s13
    %p257 = scmp.lt.s32.totalorder %s13, 3
    %p258 = pnand %p256, %p257
    %p259 = pneg %p258
    // Predicated region
    $region45: #{tpu_custom_call.1} parent=5 // pred_check
      _
    $region46: #{tpu_custom_call.1} parent=5 // pred_check_branch
      %261 = sbr.rel (%p258) target = $region48
    $region47: #{tpu_custom_call.1} parent=5 // pred_region
      %s262 = ssub.s32 %s13, 1
      %p263 = scmp.lt.s32.totalorder %s22, 1
      %s264 = scalar_select %p263, %s22, 1
      %p265 = scmp.lt.s32.totalorder %s23, 0
      %s266 = scalar_select %p265, %s23, 0
      %s267 = smul.addr %s266, 2
      %s268 = smul.addr %s264, 2
      %s269 = sadd.s32 %s267, %s268
      %s270 = smul.addr %s269, 4
      %s271 = scalar_lea.vmem %s0, %s270
      %p272 = pneg %p53
      %p273 = pneg %p50
      %p274 = pneg %p74
      %p275 = pneg %p71
      %p276 = pneg %p95
      %p277 = pneg %p92
      %p278 = pneg %p116
      %p279 = pneg %p113
      %p280 = pneg %p137
      %p281 = pneg %p134
      %p282 = pneg %p158
      %p283 = pneg %p155
      %p284 = pneg %p179
      %p285 = pneg %p176
      %p286 = pneg %p207
      %p287 = pneg %p204
      %p288 = scmp.lt.s32.totalorder %s22, 1
      %s289 = scalar_select %p288, %s22, 1
      %p290 = scmp.lt.s32.totalorder %s23, 0
      %s291 = scalar_select %p290, %s23, 0
      %s292 = sadd.s32 %s291, %s289
      %s293 = smul.addr %s292, 4
      %s294 = scalar_lea.vmem %s7, %s293
      %p295 = scmp.lt.s32.totalorder %s22, 1
      %s296 = scalar_select %p295, %s22, 1
      %p297 = scmp.lt.s32.totalorder %s23, 0
      %s298 = scalar_select %p297, %s23, 0
      %s299 = smul.addr %s298, 2
      %s300 = smul.addr %s296, 2
      %s301 = sadd.s32 %s299, %s300
      %s302 = smul.addr %s301, 4
      %s303 = scalar_lea.vmem %s0, %s302
      %p304 = scmp.lt.s32.totalorder %s22, 1
      %s305 = scalar_select %p304, %s22, 1
      %p306 = scmp.lt.s32.totalorder %s23, 0
      %s307 = scalar_select %p306, %s23, 0
      %s308 = sadd.s32 %s307, %s305
      %s309 = smul.addr %s308, 4
      %s310 = scalar_lea.vmem %s7, %s309
      %s311 = smul.u32 %s23, 128
      %s312 = ssub.s32 %s311, 4
      %v313 = vlaneseq
      %v314 = vand.u32 %v313, 127
      %v315 = vadd.s32 %v314, 128
      %v316 = vstv %s312
      %v317 = vadd.s32 %v316, %v314
      %v318 = vadd.s32 %v316, %v315
      %vm319 = vcmp.ge.s32.totalorder %v317, 0
      %vm320 = vcmp.ge.s32.totalorder %v318, 0
      %vm321 = vcmp.lt.s32.totalorder %v317, 16
      %vm322 = vcmp.lt.s32.totalorder %v318, 16
      %vm323 = vmand %vm319, %vm321
      %vm324 = vmand %vm320, %vm322
      %v325 = vld [vmem:[%s303] sm:$0x77]
      %v326 = vld [vmem:[%s1] sm:$0xff]
      %v327 = vld [vmem:[%s1 + $0x8] sm:$0xff]
      %v328 = vld [vmem:[%s1 + $0x10] sm:$0xff]
      %v329 = vld [vmem:[%s1 + $0x18] sm:$0xff]
      %v330 = vld [vmem:[%s1 + $0x20] sm:$0xff]
      %v331 = vld [vmem:[%s1 + $0x28] sm:$0xff]
      %v332 = vld [vmem:[%s1 + $0x30] sm:$0xff]
      %v333 = vld [vmem:[%s1 + $0x38] sm:$0xff]
      %v335 = vcombine.high %v325, %v325
      %336 = vrot.lane.b32.xlu0 %v325, 1
      %v337 = vpop.permute.xlu0 %336
      %338 = vrot.lane.b32.xlu0 %v335, 1
      %v339 = vpop.permute.xlu0 %338
      %vm340 = vcmask 7168
      %v341 = vsel %vm340, %v337, %v339
      %v344 = vsel %vm340, 0.0, %v337
      %345 = vrot.lane.b32.xlu0 %v325, 127
      %v346 = vpop.permute.xlu0 %345
      %347 = vrot.lane.b32.xlu0 %v335, 127
      %v348 = vpop.permute.xlu0 %347
      %vm349 = vcmask 1039360
      %v350 = vsel %vm349, %v346, %v348
      %vm352 = vcmask 56320
      %v353 = vsel %vm352, %v348, 0.0
      %v354 = vrot.slane %v325, 5
      %v355 = vrot.slane %v335, 5
      %v359 = vrot.slane %v350, 2
      %v360 = vrot.slane %v353, 2
      %vm363 = vcmask 1042432
      %v364 = vsel %vm363, %v344, %v354
      %v365 = vsel %vm363, %v341, %v355
      %vm366 = vcmask 1045504
      %v367 = vsel %vm366, %v364, %v359
      %v368 = vsel %vm366, %v365, %v360
      %v369 = vld [vmem:[%s2] sm:$0xff]
      %v370 = vld [vmem:[%s2 + $0x8] sm:$0xff]
      %v371 = vld [vmem:[%s2 + $0x10] sm:$0xff]
      %v372 = vld [vmem:[%s2 + $0x18] sm:$0xff]
      %v373 = vld [vmem:[%s2 + $0x20] sm:$0xff]
      %v374 = vld [vmem:[%s2 + $0x28] sm:$0xff]
      %v375 = vld [vmem:[%s2 + $0x30] sm:$0xff]
      %v376 = vld [vmem:[%s2 + $0x38] sm:$0xff]
      %378 = vset.pattern.permute.xlu0 0
      %379 = vperm.xlu0 %378, %v369
      %v380 = vpop.permute.xlu0 %379
      %383 = vset.pattern.permute.xlu0 0
      %384 = vperm.xlu0 %383, %v370
      %v385 = vpop.permute.xlu0 %384
      %388 = vset.pattern.permute.xlu0 0
      %389 = vperm.xlu0 %388, %v371
      %v390 = vpop.permute.xlu0 %389
      %393 = vset.pattern.permute.xlu0 0
      %394 = vperm.xlu0 %393, %v372
      %v395 = vpop.permute.xlu0 %394
      %398 = vset.pattern.permute.xlu0 0
      %399 = vperm.xlu0 %398, %v373
      %v400 = vpop.permute.xlu0 %399
      %403 = vset.pattern.permute.xlu0 0
      %404 = vperm.xlu0 %403, %v374
      %v405 = vpop.permute.xlu0 %404
      %408 = vset.pattern.permute.xlu0 0
      %409 = vperm.xlu0 %408, %v375
      %v410 = vpop.permute.xlu0 %409
      %413 = vset.pattern.permute.xlu0 0
      %414 = vperm.xlu0 %413, %v376
      %v415 = vpop.permute.xlu0 %414
      %vm417 = vcmask 72704
      %v419 = vsel %vm417, %v326, 0
      %v422 = vsel %vm417, %v327, 0
      %v425 = vsel %vm417, %v328, 0
      %v428 = vsel %vm417, %v329, 0
      %v431 = vsel %vm417, %v330, 0
      %v434 = vsel %vm417, %v331, 0
      %v437 = vsel %vm417, %v332, 0
      %v440 = vsel %vm417, %v333, 0
      %vm442 = vcmask 1040384
      %v443 = vsel %vm442, %v359, 0
      %v445 = vsel %vm442, %v360, 0
      %447 = vmatprep.subr.mxu0 %v368
      %448 = vmatpush1.msra.mxu0 %v367
      %449 = vmatprep.subr.mxu0 %v445
      %450 = vmatpush1.msra.mxu0 %v443
      %451 = vmatprep.subr.mxu0 0.0
      %452 = vmatpush1.msra.mxu0 0.0
      %453 = vmatprep.subr.mxu0 0.0
      %454 = vmatpush1.msra.mxu0 0.0
      %455 = vmatprep.subr.mxu0 0.0
      %456 = vmatpush1.msra.mxu0 0.0
      %457 = vmatprep.subr.mxu0 0.0
      %458 = vmatpush1.msra.mxu0 0.0
      %459 = vmatprep.subr.mxu0 0.0
      %460 = vmatpush1.msra.mxu0 0.0
      %461 = vmatprep.subr.mxu0 0.0
      %462 = vmatpush1.msra.mxu0 0.0
      %463 = vmatprep.subr.mxu0 0.0
      %464 = vmatpush1.msra.mxu0 0.0
      %465 = vmatprep.subr.mxu0 0.0
      %466 = vmatpush1.msra.mxu0 0.0
      %467 = vmatprep.subr.mxu0 0.0
      %468 = vmatpush1.msra.mxu0 0.0
      %469 = vmatprep.subr.mxu0 0.0
      %470 = vmatpush1.msra.mxu0 0.0
      %471 = vmatprep.subr.mxu0 0.0
      %472 = vmatpush1.msra.mxu0 0.0
      %473 = vmatprep.subr.mxu0 0.0
      %474 = vmatpush1.msra.mxu0 0.0
      %475 = vmatprep.subr.mxu0 0.0
      %476 = vmatpush1.msra.mxu0 0.0
      %477 = vmatprep.subr.mxu0 0.0
      %478 = vmatpush1.msra.mxu0 0.0
      %479 = vmatprep.subr.mxu0 0.0
      %480 = vmatpush1.msra.mxu0 0.0
      %481 = vmatprep.subr.mxu0 0.0
      %482 = vmatpush1.msra.mxu0 0.0
      %483 = vmatprep.subr.mxu0 0.0
      %484 = vmatpush1.msra.mxu0 0.0
      %485 = vmatprep.subr.mxu0 0.0
      %486 = vmatpush1.msra.mxu0 0.0
      %487 = vmatprep.subr.mxu0 0.0
      %488 = vmatpush1.msra.mxu0 0.0
      %489 = vmatprep.subr.mxu0 0.0
      %490 = vmatpush1.msra.mxu0 0.0
      %491 = vmatprep.subr.mxu0 0.0
      %492 = vmatpush1.msra.mxu0 0.0
      %493 = vmatprep.subr.mxu0 0.0
      %494 = vmatpush1.msra.mxu0 0.0
      %495 = vmatprep.subr.mxu0 0.0
      %496 = vmatpush1.msra.mxu0 0.0
      %497 = vmatprep.subr.mxu0 0.0
      %498 = vmatpush1.msra.mxu0 0.0
      %499 = vmatprep.subr.mxu0 0.0
      %500 = vmatpush1.msra.mxu0 0.0
      %501 = vmatprep.subr.mxu0 0.0
      %502 = vmatpush1.msra.mxu0 0.0
      %503 = vmatprep.subr.mxu0 0.0
      %504 = vmatpush1.msra.mxu0 0.0
      %505 = vmatprep.subr.mxu0 0.0
      %506 = vmatpush1.msra.mxu0 0.0
      %507 = vmatprep.subr.mxu0 0.0
      %508 = vmatpush1.msra.mxu0 0.0
      %509 = vmatprep.subr.mxu0 0.0
      %510 = vmatpush1.msra.mxu0 0.0
      %511 = vmatprep.mubr.f32.mxu0 0.0
      %512 = vmatmul.mubr.f32.gmra.mrb[0].mxu0 %v419
      %v513 = vpop.f32.mrb[0].mxu0
      %v514 = vadd.f32 %v380, %v513
      %v515 = vpop.f32.mrb[0].mxu0
      %v516 = vadd.f32 %v380, %v515
      %517 = vmatprep.mubr.f32.mxu0 0.0
      %518 = vmatmul.mubr.f32.gmra.mrb[0].mxu0 %v422
      %v519 = vpop.f32.mrb[0].mxu0
      %v520 = vadd.f32 %v385, %v519
      %v521 = vpop.f32.mrb[0].mxu0
      %v522 = vadd.f32 %v385, %v521
      %523 = vmatprep.mubr.f32.mxu0 0.0
      %524 = vmatmul.mubr.f32.gmra.mrb[0].mxu0 %v425
      %v525 = vpop.f32.mrb[0].mxu0
      %v526 = vadd.f32 %v390, %v525
      %v527 = vpop.f32.mrb[0].mxu0
      %v528 = vadd.f32 %v390, %v527
      %529 = vmatprep.mubr.f32.mxu0 0.0
      %530 = vmatmul.mubr.f32.gmra.mrb[0].mxu0 %v428
      %v531 = vpop.f32.mrb[0].mxu0
      %v532 = vadd.f32 %v395, %v531
      %v533 = vpop.f32.mrb[0].mxu0
      %v534 = vadd.f32 %v395, %v533
      %535 = vmatprep.mubr.f32.mxu0 0.0
      %536 = vmatmul.mubr.f32.gmra.mrb[0].mxu0 %v431
      %v537 = vpop.f32.mrb[0].mxu0
      %v538 = vadd.f32 %v400, %v537
      %v539 = vpop.f32.mrb[0].mxu0
      %v540 = vadd.f32 %v400, %v539
      %541 = vmatprep.mubr.f32.mxu0 0.0
      %542 = vmatmul.mubr.f32.gmra.mrb[0].mxu0 %v434
      %v543 = vpop.f32.mrb[0].mxu0
      %v544 = vadd.f32 %v405, %v543
      %v545 = vpop.f32.mrb[0].mxu0
      %v546 = vadd.f32 %v405, %v545
      %547 = vmatprep.mubr.f32.mxu0 0.0
      %548 = vmatmul.mubr.f32.gmra.mrb[0].mxu0 %v437
      %v549 = vpop.f32.mrb[0].mxu0
      %v550 = vadd.f32 %v410, %v549
      %v551 = vpop.f32.mrb[0].mxu0
      %v552 = vadd.f32 %v410, %v551
      %553 = vmatprep.mubr.f32.mxu0 0.0
      %554 = vmatmul.mubr.f32.gmra.mrb[0].mxu0 %v440
      %v555 = vpop.f32.mrb[0].mxu0
      %v556 = vadd.f32 %v415, %v555
      %v557 = vpop.f32.mrb[0].mxu0
      %v558 = vadd.f32 %v415, %v557
      %559 = vdwg.mxu0
      %v560 = vmax.f32 %v514, 0.0
      %v561 = vmax.f32 %v516, 0.0
      %v562 = vmax.f32 %v520, 0.0
      %v563 = vmax.f32 %v522, 0.0
      %v564 = vmax.f32 %v526, 0.0
      %v565 = vmax.f32 %v528, 0.0
      %v566 = vmax.f32 %v532, 0.0
      %v567 = vmax.f32 %v534, 0.0
      %v568 = vmax.f32 %v538, 0.0
      %v569 = vmax.f32 %v540, 0.0
      %v570 = vmax.f32 %v544, 0.0
      %v571 = vmax.f32 %v546, 0.0
      %v572 = vmax.f32 %v550, 0.0
      %v573 = vmax.f32 %v552, 0.0
      %v574 = vmax.f32 %v556, 0.0
      %v575 = vmax.f32 %v558, 0.0
      %v576 = vsel %vm323, 1, 0
      %v577 = vsel %vm324, 1, 0
      %vm578 = vcmp.eq.s32.totalorder %v576, 1
      %vm579 = vcmp.eq.s32.totalorder %v577, 1
      %v580 = vsel %vm578, %v560, 0.0
      %v581 = vsel %vm579, %v561, 0.0
      %v582 = vsel %vm578, %v562, 0.0
      %v583 = vsel %vm579, %v563, 0.0
      %v584 = vsel %vm578, %v564, 0.0
      %v585 = vsel %vm579, %v565, 0.0
      %v586 = vsel %vm578, %v566, 0.0
      %v587 = vsel %vm579, %v567, 0.0
      %v588 = vsel %vm578, %v568, 0.0
      %v589 = vsel %vm579, %v569, 0.0
      %v590 = vsel %vm578, %v570, 0.0
      %v591 = vsel %vm579, %v571, 0.0
      %v592 = vsel %vm578, %v572, 0.0
      %v593 = vsel %vm579, %v573, 0.0
      %v594 = vsel %vm578, %v574, 0.0
      %v595 = vsel %vm579, %v575, 0.0
      %v596 = vld [vmem:[%s3] sm:$0xff]
      %v597 = vld [vmem:[%s3 + $0x8] sm:$0xff]
      %v598 = vld [vmem:[%s3 + $0x10] sm:$0xff]
      %v599 = vld [vmem:[%s3 + $0x18] sm:$0xff]
      %v600 = vld [vmem:[%s3 + $0x20] sm:$0xff]
      %v601 = vld [vmem:[%s3 + $0x28] sm:$0xff]
      %v602 = vld [vmem:[%s3 + $0x30] sm:$0xff]
      %v603 = vld [vmem:[%s3 + $0x38] sm:$0xff]
      %v604 = vld [vmem:[%s3 + $0x40] sm:$0xff]
      %v605 = vld [vmem:[%s3 + $0x48] sm:$0xff]
      %v606 = vld [vmem:[%s3 + $0x50] sm:$0xff]
      %v607 = vld [vmem:[%s3 + $0x58] sm:$0xff]
      %v608 = vld [vmem:[%s3 + $0x60] sm:$0xff]
      %v609 = vld [vmem:[%s3 + $0x68] sm:$0xff]
      %v610 = vld [vmem:[%s3 + $0x70] sm:$0xff]
      %v611 = vld [vmem:[%s3 + $0x78] sm:$0xff]
      %v612 = vld [vmem:[%s3 + $0x80] sm:$0xff]
      %v613 = vld [vmem:[%s3 + $0x88] sm:$0xff]
      %v614 = vld [vmem:[%s3 + $0x90] sm:$0xff]
      %v615 = vld [vmem:[%s3 + $0x98] sm:$0xff]
      %v616 = vld [vmem:[%s3 + $0xa0] sm:$0xff]
      %v617 = vld [vmem:[%s3 + $0xa8] sm:$0xff]
      %v618 = vld [vmem:[%s3 + $0xb0] sm:$0xff]
      %v619 = vld [vmem:[%s3 + $0xb8] sm:$0xff]
      %v620 = vld [vmem:[%s3 + $0xc0] sm:$0xff]
      %v621 = vld [vmem:[%s3 + $0xc8] sm:$0xff]
      %v622 = vld [vmem:[%s3 + $0xd0] sm:$0xff]
      %v623 = vld [vmem:[%s3 + $0xd8] sm:$0xff]
      %v624 = vld [vmem:[%s3 + $0xe0] sm:$0xff]
      %v625 = vld [vmem:[%s3 + $0xe8] sm:$0xff]
      %v626 = vld [vmem:[%s3 + $0xf0] sm:$0xff]
      %v627 = vld [vmem:[%s3 + $0xf8] sm:$0xff]
      %644 = vrot.lane.b32.xlu0 %v580, 1
      %v645 = vpop.permute.xlu0 %644
      %646 = vrot.lane.b32.xlu0 %v581, 1
      %v647 = vpop.permute.xlu0 %646
      %648 = vrot.lane.b32.xlu0 %v582, 1
      %v649 = vpop.permute.xlu0 %648
      %650 = vrot.lane.b32.xlu0 %v583, 1
      %v651 = vpop.permute.xlu0 %650
      %652 = vrot.lane.b32.xlu0 %v584, 1
      %v653 = vpop.permute.xlu0 %652
      %654 = vrot.lane.b32.xlu0 %v585, 1
      %v655 = vpop.permute.xlu0 %654
      %656 = vrot.lane.b32.xlu0 %v586, 1
      %v657 = vpop.permute.xlu0 %656
      %658 = vrot.lane.b32.xlu0 %v587, 1
      %v659 = vpop.permute.xlu0 %658
      %660 = vrot.lane.b32.xlu0 %v588, 1
      %v661 = vpop.permute.xlu0 %660
      %662 = vrot.lane.b32.xlu0 %v589, 1
      %v663 = vpop.permute.xlu0 %662
      %664 = vrot.lane.b32.xlu0 %v590, 1
      %v665 = vpop.permute.xlu0 %664
      %666 = vrot.lane.b32.xlu0 %v591, 1
      %v667 = vpop.permute.xlu0 %666
      %668 = vrot.lane.b32.xlu0 %v592, 1
      %v669 = vpop.permute.xlu0 %668
      %670 = vrot.lane.b32.xlu0 %v593, 1
      %v671 = vpop.permute.xlu0 %670
      %672 = vrot.lane.b32.xlu0 %v594, 1
      %v673 = vpop.permute.xlu0 %672
      %674 = vrot.lane.b32.xlu0 %v595, 1
      %v675 = vpop.permute.xlu0 %674
      %v676 = vsel %vm340, %v645, %v647
      %v677 = vsel %vm340, %v649, %v651
      %v678 = vsel %vm340, %v653, %v655
      %v679 = vsel %vm340, %v657, %v659
      %v680 = vsel %vm340, %v661, %v663
      %v681 = vsel %vm340, %v665, %v667
      %v682 = vsel %vm340, %v669, %v671
      %v683 = vsel %vm340, %v673, %v675
      %v700 = vsel %vm340, 0.0, %v645
      %v701 = vsel %vm340, 0.0, %v649
      %v702 = vsel %vm340, 0.0, %v653
      %v703 = vsel %vm340, 0.0, %v657
      %v704 = vsel %vm340, 0.0, %v661
      %v705 = vsel %vm340, 0.0, %v665
      %v706 = vsel %vm340, 0.0, %v669
      %v707 = vsel %vm340, 0.0, %v673
      %708 = vrot.lane.b32.xlu0 %v580, 127
      %v709 = vpop.permute.xlu0 %708
      %710 = vrot.lane.b32.xlu0 %v581, 127
      %v711 = vpop.permute.xlu0 %710
      %712 = vrot.lane.b32.xlu0 %v582, 127
      %v713 = vpop.permute.xlu0 %712
      %714 = vrot.lane.b32.xlu0 %v583, 127
      %v715 = vpop.permute.xlu0 %714
      %716 = vrot.lane.b32.xlu0 %v584, 127
      %v717 = vpop.permute.xlu0 %716
      %718 = vrot.lane.b32.xlu0 %v585, 127
      %v719 = vpop.permute.xlu0 %718
      %720 = vrot.lane.b32.xlu0 %v586, 127
      %v721 = vpop.permute.xlu0 %720
      %722 = vrot.lane.b32.xlu0 %v587, 127
      %v723 = vpop.permute.xlu0 %722
      %724 = vrot.lane.b32.xlu0 %v588, 127
      %v725 = vpop.permute.xlu0 %724
      %726 = vrot.lane.b32.xlu0 %v589, 127
      %v727 = vpop.permute.xlu0 %726
      %728 = vrot.lane.b32.xlu0 %v590, 127
      %v729 = vpop.permute.xlu0 %728
      %730 = vrot.lane.b32.xlu0 %v591, 127
      %v731 = vpop.permute.xlu0 %730
      %732 = vrot.lane.b32.xlu0 %v592, 127
      %v733 = vpop.permute.xlu0 %732
      %734 = vrot.lane.b32.xlu0 %v593, 127
      %v735 = vpop.permute.xlu0 %734
      %736 = vrot.lane.b32.xlu0 %v594, 127
      %v737 = vpop.permute.xlu0 %736
      %738 = vrot.lane.b32.xlu0 %v595, 127
      %v739 = vpop.permute.xlu0 %738
      %v740 = vsel %vm349, %v709, %v711
      %v741 = vsel %vm349, %v713, %v715
      %v742 = vsel %vm349, %v717, %v719
      %v743 = vsel %vm349, %v721, %v723
      %v744 = vsel %vm349, %v725, %v727
      %v745 = vsel %vm349, %v729, %v731
      %v746 = vsel %vm349, %v733, %v735
      %v747 = vsel %vm349, %v737, %v739
      %v764 = vsel %vm352, %v711, 0.0
      %v765 = vsel %vm352, %v715, 0.0
      %v766 = vsel %vm352, %v719, 0.0
      %v767 = vsel %vm352, %v723, 0.0
      %v768 = vsel %vm352, %v727, 0.0
      %v769 = vsel %vm352, %v731, 0.0
      %v770 = vsel %vm352, %v735, 0.0
      %v771 = vsel %vm352, %v739, 0.0
      %v772 = vld [vmem:[%s4] sm:$0xff]
      %v773 = vld [vmem:[%s4 + $0x8] sm:$0xff]
      %v774 = vld [vmem:[%s4 + $0x10] sm:$0xff]
      %v775 = vld [vmem:[%s4 + $0x18] sm:$0xff]
      %v776 = vld [vmem:[%s4 + $0x20] sm:$0xff]
      %v777 = vld [vmem:[%s4 + $0x28] sm:$0xff]
      %v778 = vld [vmem:[%s4 + $0x30] sm:$0xff]
      %v779 = vld [vmem:[%s4 + $0x38] sm:$0xff]
      %v780 = vld [vmem:[%s4 + $0x40] sm:$0xff]
      %v781 = vld [vmem:[%s4 + $0x48] sm:$0xff]
      %v782 = vld [vmem:[%s4 + $0x50] sm:$0xff]
      %v783 = vld [vmem:[%s4 + $0x58] sm:$0xff]
      %v784 = vld [vmem:[%s4 + $0x60] sm:$0xff]
      %v785 = vld [vmem:[%s4 + $0x68] sm:$0xff]
      %v786 = vld [vmem:[%s4 + $0x70] sm:$0xff]
      %v787 = vld [vmem:[%s4 + $0x78] sm:$0xff]
      %789 = vset.pattern.permute.xlu0 0
      %790 = vperm.xlu0 %789, %v772
      %v791 = vpop.permute.xlu0 %790
      %794 = vset.pattern.permute.xlu0 0
      %795 = vperm.xlu0 %794, %v773
      %v796 = vpop.permute.xlu0 %795
      %799 = vset.pattern.permute.xlu0 0
      %800 = vperm.xlu0 %799, %v774
      %v801 = vpop.permute.xlu0 %800
      %804 = vset.pattern.permute.xlu0 0
      %805 = vperm.xlu0 %804, %v775
      %v806 = vpop.permute.xlu0 %805
      %809 = vset.pattern.permute.xlu0 0
      %810 = vperm.xlu0 %809, %v776
      %v811 = vpop.permute.xlu0 %810
      %814 = vset.pattern.permute.xlu0 0
      %815 = vperm.xlu0 %814, %v777
      %v816 = vpop.permute.xlu0 %815
      %819 = vset.pattern.permute.xlu0 0
      %820 = vperm.xlu0 %819, %v778
      %v821 = vpop.permute.xlu0 %820
      %824 = vset.pattern.permute.xlu0 0
      %825 = vperm.xlu0 %824, %v779
      %v826 = vpop.permute.xlu0 %825
      %829 = vset.pattern.permute.xlu0 0
      %830 = vperm.xlu0 %829, %v780
      %v831 = vpop.permute.xlu0 %830
      %834 = vset.pattern.permute.xlu0 0
      %835 = vperm.xlu0 %834, %v781
      %v836 = vpop.permute.xlu0 %835
      %839 = vset.pattern.permute.xlu0 0
      %840 = vperm.xlu0 %839, %v782
      %v841 = vpop.permute.xlu0 %840
      %844 = vset.pattern.permute.xlu0 0
      %845 = vperm.xlu0 %844, %v783
      %v846 = vpop.permute.xlu0 %845
      %849 = vset.pattern.permute.xlu0 0
      %850 = vperm.xlu0 %849, %v784
      %v851 = vpop.permute.xlu0 %850
      %854 = vset.pattern.permute.xlu0 0
      %855 = vperm.xlu0 %854, %v785
      %v856 = vpop.permute.xlu0 %855
      %859 = vset.pattern.permute.xlu0 0
      %860 = vperm.xlu0 %859, %v786
      %v861 = vpop.permute.xlu0 %860
      %864 = vset.pattern.permute.xlu0 0
      %865 = vperm.xlu0 %864, %v787
      %v866 = vpop.permute.xlu0 %865
      %vm868 = vcmask 523264
      %v870 = vsel %vm868, %v597, 0
      %v873 = vsel %vm868, %v599, 0
      %v876 = vsel %vm868, %v601, 0
      %v879 = vsel %vm868, %v603, 0
      %v882 = vsel %vm868, %v605, 0
      %v885 = vsel %vm868, %v607, 0
      %v888 = vsel %vm868, %v609, 0
      %v891 = vsel %vm868, %v611, 0
      %v894 = vsel %vm868, %v613, 0
      %v897 = vsel %vm868, %v615, 0
      %v900 = vsel %vm868, %v617, 0
      %v903 = vsel %vm868, %v619, 0
      %v906 = vsel %vm868, %v621, 0
      %v909 = vsel %vm868, %v623, 0
      %v912 = vsel %vm868, %v625, 0
      %v915 = vsel %vm868, %v627, 0
      %917 = vmatprep.subr.mxu0 %v676
      %918 = vmatpush1.msra.mxu0 %v700
      %919 = vmatprep.subr.mxu0 %v677
      %920 = vmatpush1.msra.mxu0 %v701
      %921 = vmatprep.subr.mxu0 %v678
      %922 = vmatpush1.msra.mxu0 %v702
      %923 = vmatprep.subr.mxu0 %v679
      %924 = vmatpush1.msra.mxu0 %v703
      %925 = vmatprep.subr.mxu0 %v680
      %926 = vmatpush1.msra.mxu0 %v704
      %927 = vmatprep.subr.mxu0 %v681
      %928 = vmatpush1.msra.mxu0 %v705
      %929 = vmatprep.subr.mxu0 %v682
      %930 = vmatpush1.msra.mxu0 %v706
      %931 = vmatprep.subr.mxu0 %v683
      %932 = vmatpush1.msra.mxu0 %v707
      %933 = vmatprep.subr.mxu0 %v581
      %934 = vmatpush1.msra.mxu0 %v580
      %935 = vmatprep.subr.mxu0 %v583
      %936 = vmatpush1.msra.mxu0 %v582
      %937 = vmatprep.subr.mxu0 %v585
      %938 = vmatpush1.msra.mxu0 %v584
      %939 = vmatprep.subr.mxu0 %v587
      %940 = vmatpush1.msra.mxu0 %v586
      %941 = vmatprep.subr.mxu0 %v589
      %942 = vmatpush1.msra.mxu0 %v588
      %943 = vmatprep.subr.mxu0 %v591
      %944 = vmatpush1.msra.mxu0 %v590
      %945 = vmatprep.subr.mxu0 %v593
      %946 = vmatpush1.msra.mxu0 %v592
      %947 = vmatprep.subr.mxu0 %v595
      %948 = vmatpush1.msra.mxu0 %v594
      %949 = vmatprep.subr.mxu0 %v764
      %950 = vmatpush1.msra.mxu0 %v740
      %951 = vmatprep.subr.mxu0 %v765
      %952 = vmatpush1.msra.mxu0 %v741
      %953 = vmatprep.subr.mxu0 %v766
      %954 = vmatpush1.msra.mxu0 %v742
      %955 = vmatprep.subr.mxu0 %v767
      %956 = vmatpush1.msra.mxu0 %v743
      %957 = vmatprep.subr.mxu0 %v768
      %958 = vmatpush1.msra.mxu0 %v744
      %959 = vmatprep.subr.mxu0 %v769
      %960 = vmatpush1.msra.mxu0 %v745
      %961 = vmatprep.subr.mxu0 %v770
      %962 = vmatpush1.msra.mxu0 %v746
      %963 = vmatprep.subr.mxu0 %v771
      %964 = vmatpush1.msra.mxu0 %v747
      %965 = vmatprep.subr.mxu0 0.0
      %966 = vmatpush1.msra.mxu0 0.0
      %967 = vmatprep.subr.mxu0 0.0
      %968 = vmatpush1.msra.mxu0 0.0
      %969 = vmatprep.subr.mxu0 0.0
      %970 = vmatpush1.msra.mxu0 0.0
      %971 = vmatprep.subr.mxu0 0.0
      %972 = vmatpush1.msra.mxu0 0.0
      %973 = vmatprep.subr.mxu0 0.0
      %974 = vmatpush1.msra.mxu0 0.0
      %975 = vmatprep.subr.mxu0 0.0
      %976 = vmatpush1.msra.mxu0 0.0
      %977 = vmatprep.subr.mxu0 0.0
      %978 = vmatpush1.msra.mxu0 0.0
      %979 = vmatprep.subr.mxu0 0.0
      %980 = vmatpush1.msra.mxu0 0.0
      %981 = vmatprep.mubr.f32.mxu0 %v870
      %982 = vmatmul.mubr.f32.gmra.mrb[0].mxu0 %v596
      %v983 = vpop.f32.mrb[0].mxu0
      %v984 = vadd.f32 %v791, %v983
      %v985 = vpop.f32.mrb[0].mxu0
      %v986 = vadd.f32 %v791, %v985
      %987 = vmatprep.mubr.f32.mxu0 %v873
      %988 = vmatmul.mubr.f32.gmra.mrb[0].mxu0 %v598
      %v989 = vpop.f32.mrb[0].mxu0
      %v990 = vadd.f32 %v796, %v989
      %v991 = vpop.f32.mrb[0].mxu0
      %v992 = vadd.f32 %v796, %v991
      %993 = vmatprep.mubr.f32.mxu0 %v876
      %994 = vmatmul.mubr.f32.gmra.mrb[0].mxu0 %v600
      %v995 = vpop.f32.mrb[0].mxu0
      %v996 = vadd.f32 %v801, %v995
      %v997 = vpop.f32.mrb[0].mxu0
      %v998 = vadd.f32 %v801, %v997
      %999 = vmatprep.mubr.f32.mxu0 %v879
      %1000 = vmatmul.mubr.f32.gmra.mrb[0].mxu0 %v602
      %v1001 = vpop.f32.mrb[0].mxu0
      %v1002 = vadd.f32 %v806, %v1001
      %v1003 = vpop.f32.mrb[0].mxu0
      %v1004 = vadd.f32 %v806, %v1003
      %1005 = vmatprep.mubr.f32.mxu0 %v882
      %1006 = vmatmul.mubr.f32.gmra.mrb[0].mxu0 %v604
      %v1007 = vpop.f32.mrb[0].mxu0
      %v1008 = vadd.f32 %v811, %v1007
      %v1009 = vpop.f32.mrb[0].mxu0
      %v1010 = vadd.f32 %v811, %v1009
      %1011 = vmatprep.mubr.f32.mxu0 %v885
      %1012 = vmatmul.mubr.f32.gmra.mrb[0].mxu0 %v606
      %v1013 = vpop.f32.mrb[0].mxu0
      %v1014 = vadd.f32 %v816, %v1013
      %v1015 = vpop.f32.mrb[0].mxu0
      %v1016 = vadd.f32 %v816, %v1015
      %1017 = vmatprep.mubr.f32.mxu0 %v888
      %1018 = vmatmul.mubr.f32.gmra.mrb[0].mxu0 %v608
      %v1019 = vpop.f32.mrb[0].mxu0
      %v1020 = vadd.f32 %v821, %v1019
      %v1021 = vpop.f32.mrb[0].mxu0
      %v1022 = vadd.f32 %v821, %v1021
      %1023 = vmatprep.mubr.f32.mxu0 %v891
      %1024 = vmatmul.mubr.f32.gmra.mrb[0].mxu0 %v610
      %v1025 = vpop.f32.mrb[0].mxu0
      %v1026 = vadd.f32 %v826, %v1025
      %v1027 = vpop.f32.mrb[0].mxu0
      %v1028 = vadd.f32 %v826, %v1027
      %1029 = vmatprep.mubr.f32.mxu0 %v894
      %1030 = vmatmul.mubr.f32.gmra.mrb[0].mxu0 %v612
      %v1031 = vpop.f32.mrb[0].mxu0
      %v1032 = vadd.f32 %v831, %v1031
      %v1033 = vpop.f32.mrb[0].mxu0
      %v1034 = vadd.f32 %v831, %v1033
      %1035 = vmatprep.mubr.f32.mxu0 %v897
      %1036 = vmatmul.mubr.f32.gmra.mrb[0].mxu0 %v614
      %v1037 = vpop.f32.mrb[0].mxu0
      %v1038 = vadd.f32 %v836, %v1037
      %v1039 = vpop.f32.mrb[0].mxu0
      %v1040 = vadd.f32 %v836, %v1039
      %1041 = vmatprep.mubr.f32.mxu0 %v900
      %1042 = vmatmul.mubr.f32.gmra.mrb[0].mxu0 %v616
      %v1043 = vpop.f32.mrb[0].mxu0
      %v1044 = vadd.f32 %v841, %v1043
      %v1045 = vpop.f32.mrb[0].mxu0
      %v1046 = vadd.f32 %v841, %v1045
      %1047 = vmatprep.mubr.f32.mxu0 %v903
      %1048 = vmatmul.mubr.f32.gmra.mrb[0].mxu0 %v618
      %v1049 = vpop.f32.mrb[0].mxu0
      %v1050 = vadd.f32 %v846, %v1049
      %v1051 = vpop.f32.mrb[0].mxu0
      %v1052 = vadd.f32 %v846, %v1051
      %1053 = vmatprep.mubr.f32.mxu0 %v906
      %1054 = vmatmul.mubr.f32.gmra.mrb[0].mxu0 %v620
      %v1055 = vpop.f32.mrb[0].mxu0
      %v1056 = vadd.f32 %v851, %v1055
      %v1057 = vpop.f32.mrb[0].mxu0
      %v1058 = vadd.f32 %v851, %v1057
      %1059 = vmatprep.mubr.f32.mxu0 %v909
      %1060 = vmatmul.mubr.f32.gmra.mrb[0].mxu0 %v622
      %v1061 = vpop.f32.mrb[0].mxu0
      %v1062 = vadd.f32 %v856, %v1061
      %v1063 = vpop.f32.mrb[0].mxu0
      %v1064 = vadd.f32 %v856, %v1063
      %1065 = vmatprep.mubr.f32.mxu0 %v912
      %1066 = vmatmul.mubr.f32.gmra.mrb[0].mxu0 %v624
      %v1067 = vpop.f32.mrb[0].mxu0
      %v1068 = vadd.f32 %v861, %v1067
      %v1069 = vpop.f32.mrb[0].mxu0
      %v1070 = vadd.f32 %v861, %v1069
      %1071 = vmatprep.mubr.f32.mxu0 %v915
      %1072 = vmatmul.mubr.f32.gmra.mrb[0].mxu0 %v626
      %v1073 = vpop.f32.mrb[0].mxu0
      %v1074 = vadd.f32 %v866, %v1073
      %v1075 = vpop.f32.mrb[0].mxu0
      %v1076 = vadd.f32 %v866, %v1075
      %1077 = vdwg.mxu0
      %v1078 = vmax.f32 %v984, 0.0
      %v1079 = vmax.f32 %v986, 0.0
      %v1080 = vmax.f32 %v990, 0.0
      %v1081 = vmax.f32 %v992, 0.0
      %v1082 = vmax.f32 %v996, 0.0
      %v1083 = vmax.f32 %v998, 0.0
      %v1084 = vmax.f32 %v1002, 0.0
      %v1085 = vmax.f32 %v1004, 0.0
      %v1086 = vmax.f32 %v1008, 0.0
      %v1087 = vmax.f32 %v1010, 0.0
      %v1088 = vmax.f32 %v1014, 0.0
      %v1089 = vmax.f32 %v1016, 0.0
      %v1090 = vmax.f32 %v1020, 0.0
      %v1091 = vmax.f32 %v1022, 0.0
      %v1092 = vmax.f32 %v1026, 0.0
      %v1093 = vmax.f32 %v1028, 0.0
      %v1094 = vmax.f32 %v1032, 0.0
      %v1095 = vmax.f32 %v1034, 0.0
      %v1096 = vmax.f32 %v1038, 0.0
      %v1097 = vmax.f32 %v1040, 0.0
      %v1098 = vmax.f32 %v1044, 0.0
      %v1099 = vmax.f32 %v1046, 0.0
      %v1100 = vmax.f32 %v1050, 0.0
      %v1101 = vmax.f32 %v1052, 0.0
      %v1102 = vmax.f32 %v1056, 0.0
      %v1103 = vmax.f32 %v1058, 0.0
      %v1104 = vmax.f32 %v1062, 0.0
      %v1105 = vmax.f32 %v1064, 0.0
      %v1106 = vmax.f32 %v1068, 0.0
      %v1107 = vmax.f32 %v1070, 0.0
      %v1108 = vmax.f32 %v1074, 0.0
      %v1109 = vmax.f32 %v1076, 0.0
      %v1110 = vsel %vm578, %v1078, 0.0
      %v1111 = vsel %vm579, %v1079, 0.0
      %v1112 = vsel %vm578, %v1080, 0.0
      %v1113 = vsel %vm579, %v1081, 0.0
      %v1114 = vsel %vm578, %v1082, 0.0
      %v1115 = vsel %vm579, %v1083, 0.0
      %v1116 = vsel %vm578, %v1084, 0.0
      %v1117 = vsel %vm579, %v1085, 0.0
      %v1118 = vsel %vm578, %v1086, 0.0
      %v1119 = vsel %vm579, %v1087, 0.0
      %v1120 = vsel %vm578, %v1088, 0.0
      %v1121 = vsel %vm579, %v1089, 0.0
      %v1122 = vsel %vm578, %v1090, 0.0
      %v1123 = vsel %vm579, %v1091, 0.0
      %v1124 = vsel %vm578, %v1092, 0.0
      %v1125 = vsel %vm579, %v1093, 0.0
      %v1126 = vsel %vm578, %v1094, 0.0
      %v1127 = vsel %vm579, %v1095, 0.0
      %v1128 = vsel %vm578, %v1096, 0.0
      %v1129 = vsel %vm579, %v1097, 0.0
      %v1130 = vsel %vm578, %v1098, 0.0
      %v1131 = vsel %vm579, %v1099, 0.0
      %v1132 = vsel %vm578, %v1100, 0.0
      %v1133 = vsel %vm579, %v1101, 0.0
      %v1134 = vsel %vm578, %v1102, 0.0
      %v1135 = vsel %vm579, %v1103, 0.0
      %v1136 = vsel %vm578, %v1104, 0.0
      %v1137 = vsel %vm579, %v1105, 0.0
      %v1138 = vsel %vm578, %v1106, 0.0
      %v1139 = vsel %vm579, %v1107, 0.0
      %v1140 = vsel %vm578, %v1108, 0.0
      %v1141 = vsel %vm579, %v1109, 0.0
      %v1142 = vld [vmem:[%s5] sm:$0x77]
      %v1143 = vld [vmem:[%s5 + $0x8] sm:$0x7]
      %1176 = vrot.lane.b32.xlu0 %v1110, 1
      %v1177 = vpop.permute.xlu0 %1176
      %1178 = vrot.lane.b32.xlu0 %v1111, 1
      %v1179 = vpop.permute.xlu0 %1178
      %1180 = vrot.lane.b32.xlu0 %v1112, 1
      %v1181 = vpop.permute.xlu0 %1180
      %1182 = vrot.lane.b32.xlu0 %v1113, 1
      %v1183 = vpop.permute.xlu0 %1182
      %1184 = vrot.lane.b32.xlu0 %v1114, 1
      %v1185 = vpop.permute.xlu0 %1184
      %1186 = vrot.lane.b32.xlu0 %v1115, 1
      %v1187 = vpop.permute.xlu0 %1186
      %1188 = vrot.lane.b32.xlu0 %v1116, 1
      %v1189 = vpop.permute.xlu0 %1188
      %1190 = vrot.lane.b32.xlu0 %v1117, 1
      %v1191 = vpop.permute.xlu0 %1190
      %1192 = vrot.lane.b32.xlu0 %v1118, 1
      %v1193 = vpop.permute.xlu0 %1192
      %1194 = vrot.lane.b32.xlu0 %v1119, 1
      %v1195 = vpop.permute.xlu0 %1194
      %1196 = vrot.lane.b32.xlu0 %v1120, 1
      %v1197 = vpop.permute.xlu0 %1196
      %1198 = vrot.lane.b32.xlu0 %v1121, 1
      %v1199 = vpop.permute.xlu0 %1198
      %1200 = vrot.lane.b32.xlu0 %v1122, 1
      %v1201 = vpop.permute.xlu0 %1200
      %1202 = vrot.lane.b32.xlu0 %v1123, 1
      %v1203 = vpop.permute.xlu0 %1202
      %1204 = vrot.lane.b32.xlu0 %v1124, 1
      %v1205 = vpop.permute.xlu0 %1204
      %1206 = vrot.lane.b32.xlu0 %v1125, 1
      %v1207 = vpop.permute.xlu0 %1206
      %1208 = vrot.lane.b32.xlu0 %v1126, 1
      %v1209 = vpop.permute.xlu0 %1208
      %1210 = vrot.lane.b32.xlu0 %v1127, 1
      %v1211 = vpop.permute.xlu0 %1210
      %1212 = vrot.lane.b32.xlu0 %v1128, 1
      %v1213 = vpop.permute.xlu0 %1212
      %1214 = vrot.lane.b32.xlu0 %v1129, 1
      %v1215 = vpop.permute.xlu0 %1214
      %1216 = vrot.lane.b32.xlu0 %v1130, 1
      %v1217 = vpop.permute.xlu0 %1216
      %1218 = vrot.lane.b32.xlu0 %v1131, 1
      %v1219 = vpop.permute.xlu0 %1218
      %1220 = vrot.lane.b32.xlu0 %v1132, 1
      %v1221 = vpop.permute.xlu0 %1220
      %1222 = vrot.lane.b32.xlu0 %v1133, 1
      %v1223 = vpop.permute.xlu0 %1222
      %1224 = vrot.lane.b32.xlu0 %v1134, 1
      %v1225 = vpop.permute.xlu0 %1224
      %1226 = vrot.lane.b32.xlu0 %v1135, 1
      %v1227 = vpop.permute.xlu0 %1226
      %1228 = vrot.lane.b32.xlu0 %v1136, 1
      %v1229 = vpop.permute.xlu0 %1228
      %1230 = vrot.lane.b32.xlu0 %v1137, 1
      %v1231 = vpop.permute.xlu0 %1230
      %1232 = vrot.lane.b32.xlu0 %v1138, 1
      %v1233 = vpop.permute.xlu0 %1232
      %1234 = vrot.lane.b32.xlu0 %v1139, 1
      %v1235 = vpop.permute.xlu0 %1234
      %1236 = vrot.lane.b32.xlu0 %v1140, 1
      %v1237 = vpop.permute.xlu0 %1236
      %1238 = vrot.lane.b32.xlu0 %v1141, 1
      %v1239 = vpop.permute.xlu0 %1238
      %v1240 = vsel %vm340, %v1177, %v1179
      %v1241 = vsel %vm340, %v1181, %v1183
      %v1242 = vsel %vm340, %v1185, %v1187
      %v1243 = vsel %vm340, %v1189, %v1191
      %v1244 = vsel %vm340, %v1193, %v1195
      %v1245 = vsel %vm340, %v1197, %v1199
      %v1246 = vsel %vm340, %v1201, %v1203
      %v1247 = vsel %vm340, %v1205, %v1207
      %v1248 = vsel %vm340, %v1209, %v1211
      %v1249 = vsel %vm340, %v1213, %v1215
      %v1250 = vsel %vm340, %v1217, %v1219
      %v1251 = vsel %vm340, %v1221, %v1223
      %v1252 = vsel %vm340, %v1225, %v1227
      %v1253 = vsel %vm340, %v1229, %v1231
      %v1254 = vsel %vm340, %v1233, %v1235
      %v1255 = vsel %vm340, %v1237, %v1239
      %v1288 = vsel %vm340, 0.0, %v1177
      %v1289 = vsel %vm340, 0.0, %v1181
      %v1290 = vsel %vm340, 0.0, %v1185
      %v1291 = vsel %vm340, 0.0, %v1189
      %v1292 = vsel %vm340, 0.0, %v1193
      %v1293 = vsel %vm340, 0.0, %v1197
      %v1294 = vsel %vm340, 0.0, %v1201
      %v1295 = vsel %vm340, 0.0, %v1205
      %v1296 = vsel %vm340, 0.0, %v1209
      %v1297 = vsel %vm340, 0.0, %v1213
      %v1298 = vsel %vm340, 0.0, %v1217
      %v1299 = vsel %vm340, 0.0, %v1221
      %v1300 = vsel %vm340, 0.0, %v1225
      %v1301 = vsel %vm340, 0.0, %v1229
      %v1302 = vsel %vm340, 0.0, %v1233
      %v1303 = vsel %vm340, 0.0, %v1237
      %1304 = vrot.lane.b32.xlu0 %v1110, 127
      %v1305 = vpop.permute.xlu0 %1304
      %1306 = vrot.lane.b32.xlu0 %v1111, 127
      %v1307 = vpop.permute.xlu0 %1306
      %1308 = vrot.lane.b32.xlu0 %v1112, 127
      %v1309 = vpop.permute.xlu0 %1308
      %1310 = vrot.lane.b32.xlu0 %v1113, 127
      %v1311 = vpop.permute.xlu0 %1310
      %1312 = vrot.lane.b32.xlu0 %v1114, 127
      %v1313 = vpop.permute.xlu0 %1312
      %1314 = vrot.lane.b32.xlu0 %v1115, 127
      %v1315 = vpop.permute.xlu0 %1314
      %1316 = vrot.lane.b32.xlu0 %v1116, 127
      %v1317 = vpop.permute.xlu0 %1316
      %1318 = vrot.lane.b32.xlu0 %v1117, 127
      %v1319 = vpop.permute.xlu0 %1318
      %1320 = vrot.lane.b32.xlu0 %v1118, 127
      %v1321 = vpop.permute.xlu0 %1320
      %1322 = vrot.lane.b32.xlu0 %v1119, 127
      %v1323 = vpop.permute.xlu0 %1322
      %1324 = vrot.lane.b32.xlu0 %v1120, 127
      %v1325 = vpop.permute.xlu0 %1324
      %1326 = vrot.lane.b32.xlu0 %v1121, 127
      %v1327 = vpop.permute.xlu0 %1326
      %1328 = vrot.lane.b32.xlu0 %v1122, 127
      %v1329 = vpop.permute.xlu0 %1328
      %1330 = vrot.lane.b32.xlu0 %v1123, 127
      %v1331 = vpop.permute.xlu0 %1330
      %1332 = vrot.lane.b32.xlu0 %v1124, 127
      %v1333 = vpop.permute.xlu0 %1332
      %1334 = vrot.lane.b32.xlu0 %v1125, 127
      %v1335 = vpop.permute.xlu0 %1334
      %1336 = vrot.lane.b32.xlu0 %v1126, 127
      %v1337 = vpop.permute.xlu0 %1336
      %1338 = vrot.lane.b32.xlu0 %v1127, 127
      %v1339 = vpop.permute.xlu0 %1338
      %1340 = vrot.lane.b32.xlu0 %v1128, 127
      %v1341 = vpop.permute.xlu0 %1340
      %1342 = vrot.lane.b32.xlu0 %v1129, 127
      %v1343 = vpop.permute.xlu0 %1342
      %1344 = vrot.lane.b32.xlu0 %v1130, 127
      %v1345 = vpop.permute.xlu0 %1344
      %1346 = vrot.lane.b32.xlu0 %v1131, 127
      %v1347 = vpop.permute.xlu0 %1346
      %1348 = vrot.lane.b32.xlu0 %v1132, 127
      %v1349 = vpop.permute.xlu0 %1348
      %1350 = vrot.lane.b32.xlu0 %v1133, 127
      %v1351 = vpop.permute.xlu0 %1350
      %1352 = vrot.lane.b32.xlu0 %v1134, 127
      %v1353 = vpop.permute.xlu0 %1352
      %1354 = vrot.lane.b32.xlu0 %v1135, 127
      %v1355 = vpop.permute.xlu0 %1354
      %1356 = vrot.lane.b32.xlu0 %v1136, 127
      %v1357 = vpop.permute.xlu0 %1356
      %1358 = vrot.lane.b32.xlu0 %v1137, 127
      %v1359 = vpop.permute.xlu0 %1358
      %1360 = vrot.lane.b32.xlu0 %v1138, 127
      %v1361 = vpop.permute.xlu0 %1360
      %1362 = vrot.lane.b32.xlu0 %v1139, 127
      %v1363 = vpop.permute.xlu0 %1362
      %1364 = vrot.lane.b32.xlu0 %v1140, 127
      %v1365 = vpop.permute.xlu0 %1364
      %1366 = vrot.lane.b32.xlu0 %v1141, 127
      %v1367 = vpop.permute.xlu0 %1366
      %v1368 = vsel %vm349, %v1305, %v1307
      %v1369 = vsel %vm349, %v1309, %v1311
      %v1370 = vsel %vm349, %v1313, %v1315
      %v1371 = vsel %vm349, %v1317, %v1319
      %v1372 = vsel %vm349, %v1321, %v1323
      %v1373 = vsel %vm349, %v1325, %v1327
      %v1374 = vsel %vm349, %v1329, %v1331
      %v1375 = vsel %vm349, %v1333, %v1335
      %v1376 = vsel %vm349, %v1337, %v1339
      %v1377 = vsel %vm349, %v1341, %v1343
      %v1378 = vsel %vm349, %v1345, %v1347
      %v1379 = vsel %vm349, %v1349, %v1351
      %v1380 = vsel %vm349, %v1353, %v1355
      %v1381 = vsel %vm349, %v1357, %v1359
      %v1382 = vsel %vm349, %v1361, %v1363
      %v1383 = vsel %vm349, %v1365, %v1367
      %v1416 = vsel %vm352, %v1307, 0.0
      %v1417 = vsel %vm352, %v1311, 0.0
      %v1418 = vsel %vm352, %v1315, 0.0
      %v1419 = vsel %vm352, %v1319, 0.0
      %v1420 = vsel %vm352, %v1323, 0.0
      %v1421 = vsel %vm352, %v1327, 0.0
      %v1422 = vsel %vm352, %v1331, 0.0
      %v1423 = vsel %vm352, %v1335, 0.0
      %v1424 = vsel %vm352, %v1339, 0.0
      %v1425 = vsel %vm352, %v1343, 0.0
      %v1426 = vsel %vm352, %v1347, 0.0
      %v1427 = vsel %vm352, %v1351, 0.0
      %v1428 = vsel %vm352, %v1355, 0.0
      %v1429 = vsel %vm352, %v1359, 0.0
      %v1430 = vsel %vm352, %v1363, 0.0
      %v1431 = vsel %vm352, %v1367, 0.0
      %v1432 = vld [vmem:[%s6] sm:$0x7]
      %1434 = vset.pattern.permute.xlu0 0
      %1435 = vperm.xlu0 %1434, %v1432
      %v1436 = vpop.permute.xlu0 %1435
      %v1439 = vcombine.high %v1142, %v1142
      %1441 = vmatprep.subr.mxu0 %v1240
      %1442 = vmatpush1.msra.mxu0 %v1288
      %1443 = vmatprep.subr.mxu0 %v1241
      %1444 = vmatpush1.msra.mxu0 %v1289
      %1445 = vmatprep.subr.mxu0 %v1242
      %1446 = vmatpush1.msra.mxu0 %v1290
      %1447 = vmatprep.subr.mxu0 %v1243
      %1448 = vmatpush1.msra.mxu0 %v1291
      %1449 = vmatprep.subr.mxu0 %v1244
      %1450 = vmatpush1.msra.mxu0 %v1292
      %1451 = vmatprep.subr.mxu0 %v1245
      %1452 = vmatpush1.msra.mxu0 %v1293
      %1453 = vmatprep.subr.mxu0 %v1246
      %1454 = vmatpush1.msra.mxu0 %v1294
      %1455 = vmatprep.subr.mxu0 %v1247
      %1456 = vmatpush1.msra.mxu0 %v1295
      %1457 = vmatprep.subr.mxu0 %v1248
      %1458 = vmatpush1.msra.mxu0 %v1296
      %1459 = vmatprep.subr.mxu0 %v1249
      %1460 = vmatpush1.msra.mxu0 %v1297
      %1461 = vmatprep.subr.mxu0 %v1250
      %1462 = vmatpush1.msra.mxu0 %v1298
      %1463 = vmatprep.subr.mxu0 %v1251
      %1464 = vmatpush1.msra.mxu0 %v1299
      %1465 = vmatprep.subr.mxu0 %v1252
      %1466 = vmatpush1.msra.mxu0 %v1300
      %1467 = vmatprep.subr.mxu0 %v1253
      %1468 = vmatpush1.msra.mxu0 %v1301
      %1469 = vmatprep.subr.mxu0 %v1254
      %1470 = vmatpush1.msra.mxu0 %v1302
      %1471 = vmatprep.subr.mxu0 %v1255
      %1472 = vmatpush1.msra.mxu0 %v1303
      %1473 = vmatprep.subr.mxu0 %v1111
      %1474 = vmatpush1.msra.mxu0 %v1110
      %1475 = vmatprep.subr.mxu0 %v1113
      %1476 = vmatpush1.msra.mxu0 %v1112
      %1477 = vmatprep.subr.mxu0 %v1115
      %1478 = vmatpush1.msra.mxu0 %v1114
      %1479 = vmatprep.subr.mxu0 %v1117
      %1480 = vmatpush1.msra.mxu0 %v1116
      %1481 = vmatprep.subr.mxu0 %v1119
      %1482 = vmatpush1.msra.mxu0 %v1118
      %1483 = vmatprep.subr.mxu0 %v1121
      %1484 = vmatpush1.msra.mxu0 %v1120
      %1485 = vmatprep.subr.mxu0 %v1123
      %1486 = vmatpush1.msra.mxu0 %v1122
      %1487 = vmatprep.subr.mxu0 %v1125
      %1488 = vmatpush1.msra.mxu0 %v1124
      %1489 = vmatprep.subr.mxu0 %v1127
      %1490 = vmatpush1.msra.mxu0 %v1126
      %1491 = vmatprep.subr.mxu0 %v1129
      %1492 = vmatpush1.msra.mxu0 %v1128
      %1493 = vmatprep.subr.mxu0 %v1131
      %1494 = vmatpush1.msra.mxu0 %v1130
      %1495 = vmatprep.subr.mxu0 %v1133
      %1496 = vmatpush1.msra.mxu0 %v1132
      %1497 = vmatprep.subr.mxu0 %v1135
      %1498 = vmatpush1.msra.mxu0 %v1134
      %1499 = vmatprep.subr.mxu0 %v1137
      %1500 = vmatpush1.msra.mxu0 %v1136
      %1501 = vmatprep.subr.mxu0 %v1139
      %1502 = vmatpush1.msra.mxu0 %v1138
      %1503 = vmatprep.subr.mxu0 %v1141
      %1504 = vmatpush1.msra.mxu0 %v1140
      %1505 = vmatprep.mubr.f32.mxu0 %v1439
      %1506 = vmatmul.mubr.f32.gmra.mrb[0].mxu0 %v1142
      %v1507 = vpop.f32.mrb[0].mxu0
      %v1508 = vadd.f32 %v1436, %v1507
      %v1509 = vpop.f32.mrb[0].mxu0
      %v1510 = vadd.f32 %v1436, %v1509
      %1511 = vdwg.mxu0
      %1512 = vmatprep.subr.mxu0 %v1416
      %1513 = vmatpush1.msra.mxu0 %v1368
      %1514 = vmatprep.subr.mxu0 %v1417
      %1515 = vmatpush1.msra.mxu0 %v1369
      %1516 = vmatprep.subr.mxu0 %v1418
      %1517 = vmatpush1.msra.mxu0 %v1370
      %1518 = vmatprep.subr.mxu0 %v1419
      %1519 = vmatpush1.msra.mxu0 %v1371
      %1520 = vmatprep.subr.mxu0 %v1420
      %1521 = vmatpush1.msra.mxu0 %v1372
      %1522 = vmatprep.subr.mxu0 %v1421
      %1523 = vmatpush1.msra.mxu0 %v1373
      %1524 = vmatprep.subr.mxu0 %v1422
      %1525 = vmatpush1.msra.mxu0 %v1374
      %1526 = vmatprep.subr.mxu0 %v1423
      %1527 = vmatpush1.msra.mxu0 %v1375
      %1528 = vmatprep.subr.mxu0 %v1424
      %1529 = vmatpush1.msra.mxu0 %v1376
      %1530 = vmatprep.subr.mxu0 %v1425
      %1531 = vmatpush1.msra.mxu0 %v1377
      %1532 = vmatprep.subr.mxu0 %v1426
      %1533 = vmatpush1.msra.mxu0 %v1378
      %1534 = vmatprep.subr.mxu0 %v1427
      %1535 = vmatpush1.msra.mxu0 %v1379
      %1536 = vmatprep.subr.mxu0 %v1428
      %1537 = vmatpush1.msra.mxu0 %v1380
      %1538 = vmatprep.subr.mxu0 %v1429
      %1539 = vmatpush1.msra.mxu0 %v1381
      %1540 = vmatprep.subr.mxu0 %v1430
      %1541 = vmatpush1.msra.mxu0 %v1382
      %1542 = vmatprep.subr.mxu0 %v1431
      %1543 = vmatpush1.msra.mxu0 %v1383
      %1544 = vmatprep.subr.mxu0 0.0
      %1545 = vmatpush1.msra.mxu0 0.0
      %1546 = vmatprep.subr.mxu0 0.0
      %1547 = vmatpush1.msra.mxu0 0.0
      %1548 = vmatprep.subr.mxu0 0.0
      %1549 = vmatpush1.msra.mxu0 0.0
      %1550 = vmatprep.subr.mxu0 0.0
      %1551 = vmatpush1.msra.mxu0 0.0
      %1552 = vmatprep.subr.mxu0 0.0
      %1553 = vmatpush1.msra.mxu0 0.0
      %1554 = vmatprep.subr.mxu0 0.0
      %1555 = vmatpush1.msra.mxu0 0.0
      %1556 = vmatprep.subr.mxu0 0.0
      %1557 = vmatpush1.msra.mxu0 0.0
      %1558 = vmatprep.subr.mxu0 0.0
      %1559 = vmatpush1.msra.mxu0 0.0
      %1560 = vmatprep.subr.mxu0 0.0
      %1561 = vmatpush1.msra.mxu0 0.0
      %1562 = vmatprep.subr.mxu0 0.0
      %1563 = vmatpush1.msra.mxu0 0.0
      %1564 = vmatprep.subr.mxu0 0.0
      %1565 = vmatpush1.msra.mxu0 0.0
      %1566 = vmatprep.subr.mxu0 0.0
      %1567 = vmatpush1.msra.mxu0 0.0
      %1568 = vmatprep.subr.mxu0 0.0
      %1569 = vmatpush1.msra.mxu0 0.0
      %1570 = vmatprep.subr.mxu0 0.0
      %1571 = vmatpush1.msra.mxu0 0.0
      %1572 = vmatprep.subr.mxu0 0.0
      %1573 = vmatpush1.msra.mxu0 0.0
      %1574 = vmatprep.subr.mxu0 0.0
      %1575 = vmatpush1.msra.mxu0 0.0
      %1576 = vmatprep.mubr.f32.mxu0 0.0
      %1577 = vmatmul.mubr.f32.gmra.mrb[0].mxu0 %v1143
      %v1578 = vpop.f32.mrb[0].mxu0
      %v1579 = vadd.f32 %v1508, %v1578
      %v1580 = vpop.f32.mrb[0].mxu0
      %v1581 = vadd.f32 %v1510, %v1580
      %1582 = vdwg.mxu0
      %1585 = vrot.lane.b32.xlu0 %v1579, 124
      %v1586 = vpop.permute.xlu0 %1585
      %1587 = vrot.lane.b32.xlu0 %v1581, 124
      %v1588 = vpop.permute.xlu0 %1587
      %vm1589 = vcmask 1014784
      %v1590 = vsel %vm1589, %v1586, %v1588
      %1592 = vst [vmem:[%s310] sm:$0x7] %v1590
      %p1593 = scmp.lt.s32.totalorder %s22, 1
      %s1594 = scalar_select %p1593, %s22, 1
      %p1595 = scmp.lt.s32.totalorder %s23, 0
      %s1596 = scalar_select %p1595, %s23, 0
      %s1597 = sadd.s32 %s1596, %s1594
      %s1598 = smul.addr %s1597, 4
      %s1599 = scalar_lea.vmem %s7, %s1598
      // Predicated region
      $region49: #{tpu_custom_call.1} parent=47 // pred_check
        %p1600 = pneg %p204
      $region50: #{tpu_custom_call.1} parent=47 // pred_check_branch
        %1602 = sbr.rel (%p1600) target = $region52
      $region51: #{tpu_custom_call.1} parent=47 // pred_region
        _
      $region52: #{tpu_custom_call.1} parent=47 // pred_fallthru
        _
    $region48: #{tpu_custom_call.1} parent=5 // pred_fallthru
      _
    %p1603 = scmp.le.s32.totalorder 2, %s13
    // Predicated region
    $region53: #{tpu_custom_call.1} parent=5 // pred_check
      %p1604 = pneg %p1603
    $region54: #{tpu_custom_call.1} parent=5 // pred_check_branch
      %1606 = sbr.rel (%p1604) target = $region56
    $region55: #{tpu_custom_call.1} parent=5 // pred_region
      %s1607 = ssub.s32 %s13, 2
      // Predicated region
      $region57: #{tpu_custom_call.1} parent=55 // pred_check
        %p1608 = pneg %p210
      $region58: #{tpu_custom_call.1} parent=55 // pred_check_branch
        %1610 = sbr.rel (%p1608) target = $region60
      $region59: #{tpu_custom_call.1} parent=55 // pred_region
        %p1611 = scmp.lt.s32.totalorder %s24, 1
        %s1612 = scalar_select %p1611, %s24, 1
        %p1613 = scmp.lt.s32.totalorder %s25, 0
        %s1614 = scalar_select %p1613, %s25, 0
        %s1615 = sadd.s32 %s1614, %s1612
        %s1616 = smul.addr %s1615, 4
        %s1617 = scalar_lea.vmem %s7, %s1616
      $region60: #{tpu_custom_call.1} parent=55 // pred_fallthru
        _
    $region56: #{tpu_custom_call.1} parent=5 // pred_fallthru
      _
  $region6: #{tpu_custom_call.1} parent=0 // loop_footer
    %s17 = sadd.s32 1, %s13
  $region7: #{tpu_custom_call.1} parent=0 // loop_footer_branch
    %12 = sbr.rel target = $region3
  $region8: #{tpu_custom_call.1} parent=0 // loop_exit
    _

</llo_original>
